<compile_context>
chip_gen: v5e
topology: v5e:2x2
jax: 0.10.0
libtpu: 0.0.40
codegen_flags: <defaults>
</compile_context>

<pallas_src>
import functools

import jax
import jax.numpy as jnp
from jax.experimental import pallas as pl
from jax.experimental.pallas import tpu as pltpu


def _cdiv(a, b):
    return -(-a // b)


def _linear_time_kernel(w_ref, b_ref, x_ref, o_ref, *, C_in, C_out, Kt, W_out):
    # w_ref: (C_in*Kt*C_out,) f32 SMEM, laid out w[(ci*Kt + kt)*C_out + co] = weight[co, ci, 0, kt]
    # b_ref: (C_out,)         f32 SMEM
    # x_ref: (TB, C_in, H, W)       VMEM, native NCHW tile
    # o_ref: (TB, C_out, H, W_out)  VMEM, native NCHW tile (no lane padding)
    xv = x_ref[...].astype(jnp.float32)                       # load the tile once

    # In-kernel "im2col": pre-slice the Kt shifted windows once (static lane shifts).
    slabs = [[xv[:, ci, :, kt:kt + W_out] for kt in range(Kt)]
             for ci in range(C_in)]                            # each (TB, H, W_out)

    # TODO(synk): for large C_in*Kt this unrolled VPU contraction should switch to an
    # in-kernel im2col + MXU matmul; for conv (1, Kt) with tiny channels the VPU path wins.
    for co in range(C_out):
        acc = jnp.full(slabs[0][0].shape, b_ref[co], dtype=jnp.float32)
        for ci in range(C_in):
            for kt in range(Kt):
                acc = acc + w_ref[(ci * Kt + kt) * C_out + co] * slabs[ci][kt]
        o_ref[:, co, :, :] = acc.astype(o_ref.dtype)


def linear_time_forward(x, weight, bias):
    """x: (B, C_in, H, W) NCHW; weight: (C_out, C_in, 1, Kt); bias: (C_out,)."""
    B, C_in, H, W = x.shape
    C_out, _, _, Kt = weight.shape
    W_out = W - Kt + 1
    if W_out <= 0:
        raise ValueError(f"W={W} must be >= Kt={Kt} for valid padding")

    # ---- batch tile size: single grid step when it fits; bounded by VMEM + vreg pressure ----
    itemsize = x.dtype.itemsize
    h_sub = _cdiv(H, 8) * 8
    w_lane_in = _cdiv(W, 128) * 128
    w_lane_out = _cdiv(W_out, 128) * 128
    bytes_per_batch = (C_in * h_sub * w_lane_in + C_out * h_sub * w_lane_out) * itemsize
    tb_vmem = max(1, (4 << 20) // bytes_per_batch)             # far under scoped-VMEM default (2x buffered)
    vregs_per_batch = (C_in * Kt + 1) * _cdiv(H, 8) * _cdiv(W_out, 128)
    tb_vreg = max(1, 40 // vregs_per_batch)                    # keep live slabs + acc in vregs
    TB = int(max(1, min(B, tb_vmem, tb_vreg)))
    num_tiles = _cdiv(B, TB)                                   # no forced >=2 split for tiny inputs

    # Tiny parameter re-layout (96 floats): kt/ci-major flat weight + bias, both as SMEM scalars.
    w_flat = jnp.transpose(weight[:, :, 0, :], (1, 2, 0)).reshape(C_in * Kt * C_out)
    w_flat = w_flat.astype(jnp.float32)
    b_flat = bias.astype(jnp.float32)

    kernel = functools.partial(
        _linear_time_kernel, C_in=C_in, C_out=C_out, Kt=Kt, W_out=W_out)

    return pl.pallas_call(
        kernel,
        out_shape=jax.ShapeDtypeStruct((B, C_out, H, W_out), x.dtype),
        grid=(num_tiles,),
        in_specs=[
            pl.BlockSpec(memory_space=pltpu.MemorySpace.SMEM),        # weight scalars
            pl.BlockSpec(memory_space=pltpu.MemorySpace.SMEM),        # bias scalars
            pl.BlockSpec((TB, C_in, H, W), lambda i: (i, 0, 0, 0)),   # native NCHW input tile
        ],
        out_specs=pl.BlockSpec((TB, C_out, H, W_out), lambda i: (i, 0, 0, 0)),
        compiler_params=pltpu.CompilerParams(dimension_semantics=("parallel",)),
    )(w_flat, b_flat, x)


def _reference(x, weight, bias):
    out = jax.lax.conv_general_dilated(
        x, weight, window_strides=(1, 1), padding="VALID",
        dimension_numbers=("NCHW", "OIHW", "NCHW"))
    return out + bias[None, :, None, None]


if __name__ == "__main__":
    # Small shapes consistent with the module: NCHW input, Conv2d kernel (1, Kt).
    B, C_in, C_out, H, W, Kt = 2, 4, 8, 4, 16, 3

    key = jax.random.PRNGKey(0)
    kx, kw, kb = jax.random.split(key, 3)
    x = jax.random.normal(kx, (B, C_in, H, W), dtype=jnp.float32)
    weight = jax.random.normal(kw, (C_out, C_in, 1, Kt), dtype=jnp.float32) * 0.1
    bias = jax.random.normal(kb, (C_out,), dtype=jnp.float32) * 0.1

    y = jax.block_until_ready(linear_time_forward(x, weight, bias))
    y_ref = jax.block_until_ready(_reference(x, weight, bias))

    assert y.shape == (B, C_out, H, W - Kt + 1), y.shape
    assert jnp.allclose(y, y_ref, atol=1e-4, rtol=1e-4), float(jnp.max(jnp.abs(y - y_ref)))
    print("KERNEL_OK")
</pallas_src>

<mosaic_0001>
module attributes {stable_mosaic.version = 11 : i64} {
  func.func @_linear_time_kernel(%arg0: i32, %arg1: memref<96xf32, #tpu.memory_space<smem>>, %arg2: memref<8xf32, #tpu.memory_space<smem>>, %arg3: memref<2x4x4x16xf32, #tpu.memory_space<vmem>>, %arg4: memref<2x8x4x14xf32, #tpu.memory_space<vmem>>) attributes {dimension_semantics = [#tpu.dimension_semantics<parallel>], iteration_bounds = array<i64: 1>, scalar_prefetch = 0 : i64, scratch_operands = 0 : i64, tpu.core_type = #tpu.core_type<tc>, window_params = [{transform_indices = @transform_0, window_bounds = array<i64: 96>}, {transform_indices = @transform_1, window_bounds = array<i64: 8>}, {transform_indices = @transform_2, window_bounds = array<i64: 2, 4, 4, 16>}, {transform_indices = @transform_3, window_bounds = array<i64: 2, 8, 4, 14>}]} {
    %c0 = arith.constant 0 : index
    %c0_0 = arith.constant 0 : index
    %c0_1 = arith.constant 0 : index
    %c0_2 = arith.constant 0 : index
    %0 = vector.load %arg3[%c0, %c0_0, %c0_1, %c0_2] : memref<2x4x4x16xf32, #tpu.memory_space<vmem>>, vector<2x4x4x16xf32>
    %1 = vector.extract_strided_slice %0 {offsets = [0, 0, 0, 0], sizes = [2, 1, 4, 14], strides = [1, 1, 1, 1]} : vector<2x4x4x16xf32> to vector<2x1x4x14xf32>
    %2 = vector.shape_cast %1 : vector<2x1x4x14xf32> to vector<2x4x14xf32>
    %3 = vector.extract_strided_slice %0 {offsets = [0, 0, 0, 1], sizes = [2, 1, 4, 14], strides = [1, 1, 1, 1]} : vector<2x4x4x16xf32> to vector<2x1x4x14xf32>
    %4 = vector.shape_cast %3 : vector<2x1x4x14xf32> to vector<2x4x14xf32>
    %5 = vector.extract_strided_slice %0 {offsets = [0, 0, 0, 2], sizes = [2, 1, 4, 14], strides = [1, 1, 1, 1]} : vector<2x4x4x16xf32> to vector<2x1x4x14xf32>
    %6 = vector.shape_cast %5 : vector<2x1x4x14xf32> to vector<2x4x14xf32>
    %7 = vector.extract_strided_slice %0 {offsets = [0, 1, 0, 0], sizes = [2, 1, 4, 14], strides = [1, 1, 1, 1]} : vector<2x4x4x16xf32> to vector<2x1x4x14xf32>
    %8 = vector.shape_cast %7 : vector<2x1x4x14xf32> to vector<2x4x14xf32>
    %9 = vector.extract_strided_slice %0 {offsets = [0, 1, 0, 1], sizes = [2, 1, 4, 14], strides = [1, 1, 1, 1]} : vector<2x4x4x16xf32> to vector<2x1x4x14xf32>
    %10 = vector.shape_cast %9 : vector<2x1x4x14xf32> to vector<2x4x14xf32>
    %11 = vector.extract_strided_slice %0 {offsets = [0, 1, 0, 2], sizes = [2, 1, 4, 14], strides = [1, 1, 1, 1]} : vector<2x4x4x16xf32> to vector<2x1x4x14xf32>
    %12 = vector.shape_cast %11 : vector<2x1x4x14xf32> to vector<2x4x14xf32>
    %13 = vector.extract_strided_slice %0 {offsets = [0, 2, 0, 0], sizes = [2, 1, 4, 14], strides = [1, 1, 1, 1]} : vector<2x4x4x16xf32> to vector<2x1x4x14xf32>
    %14 = vector.shape_cast %13 : vector<2x1x4x14xf32> to vector<2x4x14xf32>
    %15 = vector.extract_strided_slice %0 {offsets = [0, 2, 0, 1], sizes = [2, 1, 4, 14], strides = [1, 1, 1, 1]} : vector<2x4x4x16xf32> to vector<2x1x4x14xf32>
    %16 = vector.shape_cast %15 : vector<2x1x4x14xf32> to vector<2x4x14xf32>
    %17 = vector.extract_strided_slice %0 {offsets = [0, 2, 0, 2], sizes = [2, 1, 4, 14], strides = [1, 1, 1, 1]} : vector<2x4x4x16xf32> to vector<2x1x4x14xf32>
    %18 = vector.shape_cast %17 : vector<2x1x4x14xf32> to vector<2x4x14xf32>
    %19 = vector.extract_strided_slice %0 {offsets = [0, 3, 0, 0], sizes = [2, 1, 4, 14], strides = [1, 1, 1, 1]} : vector<2x4x4x16xf32> to vector<2x1x4x14xf32>
    %20 = vector.shape_cast %19 : vector<2x1x4x14xf32> to vector<2x4x14xf32>
    %21 = vector.extract_strided_slice %0 {offsets = [0, 3, 0, 1], sizes = [2, 1, 4, 14], strides = [1, 1, 1, 1]} : vector<2x4x4x16xf32> to vector<2x1x4x14xf32>
    %22 = vector.shape_cast %21 : vector<2x1x4x14xf32> to vector<2x4x14xf32>
    %23 = vector.extract_strided_slice %0 {offsets = [0, 3, 0, 2], sizes = [2, 1, 4, 14], strides = [1, 1, 1, 1]} : vector<2x4x4x16xf32> to vector<2x1x4x14xf32>
    %24 = vector.shape_cast %23 : vector<2x1x4x14xf32> to vector<2x4x14xf32>
    %c0_3 = arith.constant 0 : index
    %25 = memref.load %arg2[%c0_3] : memref<8xf32, #tpu.memory_space<smem>>
    %26 = vector.broadcast %25 : f32 to vector<2x4x14xf32>
    %c0_4 = arith.constant 0 : index
    %27 = memref.load %arg1[%c0_4] : memref<96xf32, #tpu.memory_space<smem>>
    %28 = vector.broadcast %27 : f32 to vector<2x4x14xf32>
    %29 = arith.mulf %28, %2 : vector<2x4x14xf32>
    %30 = arith.addf %26, %29 : vector<2x4x14xf32>
    %c8 = arith.constant 8 : index
    %31 = memref.load %arg1[%c8] : memref<96xf32, #tpu.memory_space<smem>>
    %32 = vector.broadcast %31 : f32 to vector<2x4x14xf32>
    %33 = arith.mulf %32, %4 : vector<2x4x14xf32>
    %34 = arith.addf %30, %33 : vector<2x4x14xf32>
    %c16 = arith.constant 16 : index
    %35 = memref.load %arg1[%c16] : memref<96xf32, #tpu.memory_space<smem>>
    %36 = vector.broadcast %35 : f32 to vector<2x4x14xf32>
    %37 = arith.mulf %36, %6 : vector<2x4x14xf32>
    %38 = arith.addf %34, %37 : vector<2x4x14xf32>
    %c24 = arith.constant 24 : index
    %39 = memref.load %arg1[%c24] : memref<96xf32, #tpu.memory_space<smem>>
    %40 = vector.broadcast %39 : f32 to vector<2x4x14xf32>
    %41 = arith.mulf %40, %8 : vector<2x4x14xf32>
    %42 = arith.addf %38, %41 : vector<2x4x14xf32>
    %c32 = arith.constant 32 : index
    %43 = memref.load %arg1[%c32] : memref<96xf32, #tpu.memory_space<smem>>
    %44 = vector.broadcast %43 : f32 to vector<2x4x14xf32>
    %45 = arith.mulf %44, %10 : vector<2x4x14xf32>
    %46 = arith.addf %42, %45 : vector<2x4x14xf32>
    %c40 = arith.constant 40 : index
    %47 = memref.load %arg1[%c40] : memref<96xf32, #tpu.memory_space<smem>>
    %48 = vector.broadcast %47 : f32 to vector<2x4x14xf32>
    %49 = arith.mulf %48, %12 : vector<2x4x14xf32>
    %50 = arith.addf %46, %49 : vector<2x4x14xf32>
    %c48 = arith.constant 48 : index
    %51 = memref.load %arg1[%c48] : memref<96xf32, #tpu.memory_space<smem>>
    %52 = vector.broadcast %51 : f32 to vector<2x4x14xf32>
    %53 = arith.mulf %52, %14 : vector<2x4x14xf32>
    %54 = arith.addf %50, %53 : vector<2x4x14xf32>
    %c56 = arith.constant 56 : index
    %55 = memref.load %arg1[%c56] : memref<96xf32, #tpu.memory_space<smem>>
    %56 = vector.broadcast %55 : f32 to vector<2x4x14xf32>
    %57 = arith.mulf %56, %16 : vector<2x4x14xf32>
    %58 = arith.addf %54, %57 : vector<2x4x14xf32>
    %c64 = arith.constant 64 : index
    %59 = memref.load %arg1[%c64] : memref<96xf32, #tpu.memory_space<smem>>
    %60 = vector.broadcast %59 : f32 to vector<2x4x14xf32>
    %61 = arith.mulf %60, %18 : vector<2x4x14xf32>
    %62 = arith.addf %58, %61 : vector<2x4x14xf32>
    %c72 = arith.constant 72 : index
    %63 = memref.load %arg1[%c72] : memref<96xf32, #tpu.memory_space<smem>>
    %64 = vector.broadcast %63 : f32 to vector<2x4x14xf32>
    %65 = arith.mulf %64, %20 : vector<2x4x14xf32>
    %66 = arith.addf %62, %65 : vector<2x4x14xf32>
    %c80 = arith.constant 80 : index
    %67 = memref.load %arg1[%c80] : memref<96xf32, #tpu.memory_space<smem>>
    %68 = vector.broadcast %67 : f32 to vector<2x4x14xf32>
    %69 = arith.mulf %68, %22 : vector<2x4x14xf32>
    %70 = arith.addf %66, %69 : vector<2x4x14xf32>
    %c88 = arith.constant 88 : index
    %71 = memref.load %arg1[%c88] : memref<96xf32, #tpu.memory_space<smem>>
    %72 = vector.broadcast %71 : f32 to vector<2x4x14xf32>
    %73 = arith.mulf %72, %24 : vector<2x4x14xf32>
    %74 = arith.addf %70, %73 : vector<2x4x14xf32>
    %c0_5 = arith.constant 0 : index
    %c0_6 = arith.constant 0 : index
    %c0_7 = arith.constant 0 : index
    %c0_8 = arith.constant 0 : index
    %75 = vector.load %arg4[%c0_5, %c0_6, %c0_7, %c0_8] : memref<2x8x4x14xf32, #tpu.memory_space<vmem>>, vector<2x1x4x14xf32>
    %76 = vector.shape_cast %75 : vector<2x1x4x14xf32> to vector<2x4x14xf32>
    %77 = vector.shape_cast %74 : vector<2x4x14xf32> to vector<2x1x4x14xf32>
    tpu.vector_store %arg4[%c0_5, %c0_6, %c0_7, %c0_8], %77 {strides = array<i32>} : memref<2x8x4x14xf32, #tpu.memory_space<vmem>>, vector<2x1x4x14xf32>,
    %c1 = arith.constant 1 : index
    %78 = memref.load %arg2[%c1] : memref<8xf32, #tpu.memory_space<smem>>
    %79 = vector.broadcast %78 : f32 to vector<2x4x14xf32>
    %c1_9 = arith.constant 1 : index
    %80 = memref.load %arg1[%c1_9] : memref<96xf32, #tpu.memory_space<smem>>
    %81 = vector.broadcast %80 : f32 to vector<2x4x14xf32>
    %82 = arith.mulf %81, %2 : vector<2x4x14xf32>
    %83 = arith.addf %79, %82 : vector<2x4x14xf32>
    %c9 = arith.constant 9 : index
    %84 = memref.load %arg1[%c9] : memref<96xf32, #tpu.memory_space<smem>>
    %85 = vector.broadcast %84 : f32 to vector<2x4x14xf32>
    %86 = arith.mulf %85, %4 : vector<2x4x14xf32>
    %87 = arith.addf %83, %86 : vector<2x4x14xf32>
    %c17 = arith.constant 17 : index
    %88 = memref.load %arg1[%c17] : memref<96xf32, #tpu.memory_space<smem>>
    %89 = vector.broadcast %88 : f32 to vector<2x4x14xf32>
    %90 = arith.mulf %89, %6 : vector<2x4x14xf32>
    %91 = arith.addf %87, %90 : vector<2x4x14xf32>
    %c25 = arith.constant 25 : index
    %92 = memref.load %arg1[%c25] : memref<96xf32, #tpu.memory_space<smem>>
    %93 = vector.broadcast %92 : f32 to vector<2x4x14xf32>
    %94 = arith.mulf %93, %8 : vector<2x4x14xf32>
    %95 = arith.addf %91, %94 : vector<2x4x14xf32>
    %c33 = arith.constant 33 : index
    %96 = memref.load %arg1[%c33] : memref<96xf32, #tpu.memory_space<smem>>
    %97 = vector.broadcast %96 : f32 to vector<2x4x14xf32>
    %98 = arith.mulf %97, %10 : vector<2x4x14xf32>
    %99 = arith.addf %95, %98 : vector<2x4x14xf32>
    %c41 = arith.constant 41 : index
    %100 = memref.load %arg1[%c41] : memref<96xf32, #tpu.memory_space<smem>>
    %101 = vector.broadcast %100 : f32 to vector<2x4x14xf32>
    %102 = arith.mulf %101, %12 : vector<2x4x14xf32>
    %103 = arith.addf %99, %102 : vector<2x4x14xf32>
    %c49 = arith.constant 49 : index
    %104 = memref.load %arg1[%c49] : memref<96xf32, #tpu.memory_space<smem>>
    %105 = vector.broadcast %104 : f32 to vector<2x4x14xf32>
    %106 = arith.mulf %105, %14 : vector<2x4x14xf32>
    %107 = arith.addf %103, %106 : vector<2x4x14xf32>
    %c57 = arith.constant 57 : index
    %108 = memref.load %arg1[%c57] : memref<96xf32, #tpu.memory_space<smem>>
    %109 = vector.broadcast %108 : f32 to vector<2x4x14xf32>
    %110 = arith.mulf %109, %16 : vector<2x4x14xf32>
    %111 = arith.addf %107, %110 : vector<2x4x14xf32>
    %c65 = arith.constant 65 : index
    %112 = memref.load %arg1[%c65] : memref<96xf32, #tpu.memory_space<smem>>
    %113 = vector.broadcast %112 : f32 to vector<2x4x14xf32>
    %114 = arith.mulf %113, %18 : vector<2x4x14xf32>
    %115 = arith.addf %111, %114 : vector<2x4x14xf32>
    %c73 = arith.constant 73 : index
    %116 = memref.load %arg1[%c73] : memref<96xf32, #tpu.memory_space<smem>>
    %117 = vector.broadcast %116 : f32 to vector<2x4x14xf32>
    %118 = arith.mulf %117, %20 : vector<2x4x14xf32>
    %119 = arith.addf %115, %118 : vector<2x4x14xf32>
    %c81 = arith.constant 81 : index
    %120 = memref.load %arg1[%c81] : memref<96xf32, #tpu.memory_space<smem>>
    %121 = vector.broadcast %120 : f32 to vector<2x4x14xf32>
    %122 = arith.mulf %121, %22 : vector<2x4x14xf32>
    %123 = arith.addf %119, %122 : vector<2x4x14xf32>
    %c89 = arith.constant 89 : index
    %124 = memref.load %arg1[%c89] : memref<96xf32, #tpu.memory_space<smem>>
    %125 = vector.broadcast %124 : f32 to vector<2x4x14xf32>
    %126 = arith.mulf %125, %24 : vector<2x4x14xf32>
    %127 = arith.addf %123, %126 : vector<2x4x14xf32>
    %c0_10 = arith.constant 0 : index
    %c1_11 = arith.constant 1 : index
    %c0_12 = arith.constant 0 : index
    %c0_13 = arith.constant 0 : index
    %128 = vector.load %arg4[%c0_10, %c1_11, %c0_12, %c0_13] : memref<2x8x4x14xf32, #tpu.memory_space<vmem>>, vector<2x1x4x14xf32>
    %129 = vector.shape_cast %128 : vector<2x1x4x14xf32> to vector<2x4x14xf32>
    %130 = vector.shape_cast %127 : vector<2x4x14xf32> to vector<2x1x4x14xf32>
    tpu.vector_store %arg4[%c0_10, %c1_11, %c0_12, %c0_13], %130 {strides = array<i32>} : memref<2x8x4x14xf32, #tpu.memory_space<vmem>>, vector<2x1x4x14xf32>,
    %c2 = arith.constant 2 : index
    %131 = memref.load %arg2[%c2] : memref<8xf32, #tpu.memory_space<smem>>
    %132 = vector.broadcast %131 : f32 to vector<2x4x14xf32>
    %c2_14 = arith.constant 2 : index
    %133 = memref.load %arg1[%c2_14] : memref<96xf32, #tpu.memory_space<smem>>
    %134 = vector.broadcast %133 : f32 to vector<2x4x14xf32>
    %135 = arith.mulf %134, %2 : vector<2x4x14xf32>
    %136 = arith.addf %132, %135 : vector<2x4x14xf32>
    %c10 = arith.constant 10 : index
    %137 = memref.load %arg1[%c10] : memref<96xf32, #tpu.memory_space<smem>>
    %138 = vector.broadcast %137 : f32 to vector<2x4x14xf32>
    %139 = arith.mulf %138, %4 : vector<2x4x14xf32>
    %140 = arith.addf %136, %139 : vector<2x4x14xf32>
    %c18 = arith.constant 18 : index
    %141 = memref.load %arg1[%c18] : memref<96xf32, #tpu.memory_space<smem>>
    %142 = vector.broadcast %141 : f32 to vector<2x4x14xf32>
    %143 = arith.mulf %142, %6 : vector<2x4x14xf32>
    %144 = arith.addf %140, %143 : vector<2x4x14xf32>
    %c26 = arith.constant 26 : index
    %145 = memref.load %arg1[%c26] : memref<96xf32, #tpu.memory_space<smem>>
    %146 = vector.broadcast %145 : f32 to vector<2x4x14xf32>
    %147 = arith.mulf %146, %8 : vector<2x4x14xf32>
    %148 = arith.addf %144, %147 : vector<2x4x14xf32>
    %c34 = arith.constant 34 : index
    %149 = memref.load %arg1[%c34] : memref<96xf32, #tpu.memory_space<smem>>
    %150 = vector.broadcast %149 : f32 to vector<2x4x14xf32>
    %151 = arith.mulf %150, %10 : vector<2x4x14xf32>
    %152 = arith.addf %148, %151 : vector<2x4x14xf32>
    %c42 = arith.constant 42 : index
    %153 = memref.load %arg1[%c42] : memref<96xf32, #tpu.memory_space<smem>>
    %154 = vector.broadcast %153 : f32 to vector<2x4x14xf32>
    %155 = arith.mulf %154, %12 : vector<2x4x14xf32>
    %156 = arith.addf %152, %155 : vector<2x4x14xf32>
    %c50 = arith.constant 50 : index
    %157 = memref.load %arg1[%c50] : memref<96xf32, #tpu.memory_space<smem>>
    %158 = vector.broadcast %157 : f32 to vector<2x4x14xf32>
    %159 = arith.mulf %158, %14 : vector<2x4x14xf32>
    %160 = arith.addf %156, %159 : vector<2x4x14xf32>
    %c58 = arith.constant 58 : index
    %161 = memref.load %arg1[%c58] : memref<96xf32, #tpu.memory_space<smem>>
    %162 = vector.broadcast %161 : f32 to vector<2x4x14xf32>
    %163 = arith.mulf %162, %16 : vector<2x4x14xf32>
    %164 = arith.addf %160, %163 : vector<2x4x14xf32>
    %c66 = arith.constant 66 : index
    %165 = memref.load %arg1[%c66] : memref<96xf32, #tpu.memory_space<smem>>
    %166 = vector.broadcast %165 : f32 to vector<2x4x14xf32>
    %167 = arith.mulf %166, %18 : vector<2x4x14xf32>
    %168 = arith.addf %164, %167 : vector<2x4x14xf32>
    %c74 = arith.constant 74 : index
    %169 = memref.load %arg1[%c74] : memref<96xf32, #tpu.memory_space<smem>>
    %170 = vector.broadcast %169 : f32 to vector<2x4x14xf32>
    %171 = arith.mulf %170, %20 : vector<2x4x14xf32>
    %172 = arith.addf %168, %171 : vector<2x4x14xf32>
    %c82 = arith.constant 82 : index
    %173 = memref.load %arg1[%c82] : memref<96xf32, #tpu.memory_space<smem>>
    %174 = vector.broadcast %173 : f32 to vector<2x4x14xf32>
    %175 = arith.mulf %174, %22 : vector<2x4x14xf32>
    %176 = arith.addf %172, %175 : vector<2x4x14xf32>
    %c90 = arith.constant 90 : index
    %177 = memref.load %arg1[%c90] : memref<96xf32, #tpu.memory_space<smem>>
    %178 = vector.broadcast %177 : f32 to vector<2x4x14xf32>
    %179 = arith.mulf %178, %24 : vector<2x4x14xf32>
    %180 = arith.addf %176, %179 : vector<2x4x14xf32>
    %c0_15 = arith.constant 0 : index
    %c2_16 = arith.constant 2 : index
    %c0_17 = arith.constant 0 : index
    %c0_18 = arith.constant 0 : index
    %181 = vector.load %arg4[%c0_15, %c2_16, %c0_17, %c0_18] : memref<2x8x4x14xf32, #tpu.memory_space<vmem>>, vector<2x1x4x14xf32>
    %182 = vector.shape_cast %181 : vector<2x1x4x14xf32> to vector<2x4x14xf32>
    %183 = vector.shape_cast %180 : vector<2x4x14xf32> to vector<2x1x4x14xf32>
    tpu.vector_store %arg4[%c0_15, %c2_16, %c0_17, %c0_18], %183 {strides = array<i32>} : memref<2x8x4x14xf32, #tpu.memory_space<vmem>>, vector<2x1x4x14xf32>,
    %c3 = arith.constant 3 : index
    %184 = memref.load %arg2[%c3] : memref<8xf32, #tpu.memory_space<smem>>
    %185 = vector.broadcast %184 : f32 to vector<2x4x14xf32>
    %c3_19 = arith.constant 3 : index
    %186 = memref.load %arg1[%c3_19] : memref<96xf32, #tpu.memory_space<smem>>
    %187 = vector.broadcast %186 : f32 to vector<2x4x14xf32>
    %188 = arith.mulf %187, %2 : vector<2x4x14xf32>
    %189 = arith.addf %185, %188 : vector<2x4x14xf32>
    %c11 = arith.constant 11 : index
    %190 = memref.load %arg1[%c11] : memref<96xf32, #tpu.memory_space<smem>>
    %191 = vector.broadcast %190 : f32 to vector<2x4x14xf32>
    %192 = arith.mulf %191, %4 : vector<2x4x14xf32>
    %193 = arith.addf %189, %192 : vector<2x4x14xf32>
    %c19 = arith.constant 19 : index
    %194 = memref.load %arg1[%c19] : memref<96xf32, #tpu.memory_space<smem>>
    %195 = vector.broadcast %194 : f32 to vector<2x4x14xf32>
    %196 = arith.mulf %195, %6 : vector<2x4x14xf32>
    %197 = arith.addf %193, %196 : vector<2x4x14xf32>
    %c27 = arith.constant 27 : index
    %198 = memref.load %arg1[%c27] : memref<96xf32, #tpu.memory_space<smem>>
    %199 = vector.broadcast %198 : f32 to vector<2x4x14xf32>
    %200 = arith.mulf %199, %8 : vector<2x4x14xf32>
    %201 = arith.addf %197, %200 : vector<2x4x14xf32>
    %c35 = arith.constant 35 : index
    %202 = memref.load %arg1[%c35] : memref<96xf32, #tpu.memory_space<smem>>
    %203 = vector.broadcast %202 : f32 to vector<2x4x14xf32>
    %204 = arith.mulf %203, %10 : vector<2x4x14xf32>
    %205 = arith.addf %201, %204 : vector<2x4x14xf32>
    %c43 = arith.constant 43 : index
    %206 = memref.load %arg1[%c43] : memref<96xf32, #tpu.memory_space<smem>>
    %207 = vector.broadcast %206 : f32 to vector<2x4x14xf32>
    %208 = arith.mulf %207, %12 : vector<2x4x14xf32>
    %209 = arith.addf %205, %208 : vector<2x4x14xf32>
    %c51 = arith.constant 51 : index
    %210 = memref.load %arg1[%c51] : memref<96xf32, #tpu.memory_space<smem>>
    %211 = vector.broadcast %210 : f32 to vector<2x4x14xf32>
    %212 = arith.mulf %211, %14 : vector<2x4x14xf32>
    %213 = arith.addf %209, %212 : vector<2x4x14xf32>
    %c59 = arith.constant 59 : index
    %214 = memref.load %arg1[%c59] : memref<96xf32, #tpu.memory_space<smem>>
    %215 = vector.broadcast %214 : f32 to vector<2x4x14xf32>
    %216 = arith.mulf %215, %16 : vector<2x4x14xf32>
    %217 = arith.addf %213, %216 : vector<2x4x14xf32>
    %c67 = arith.constant 67 : index
    %218 = memref.load %arg1[%c67] : memref<96xf32, #tpu.memory_space<smem>>
    %219 = vector.broadcast %218 : f32 to vector<2x4x14xf32>
    %220 = arith.mulf %219, %18 : vector<2x4x14xf32>
    %221 = arith.addf %217, %220 : vector<2x4x14xf32>
    %c75 = arith.constant 75 : index
    %222 = memref.load %arg1[%c75] : memref<96xf32, #tpu.memory_space<smem>>
    %223 = vector.broadcast %222 : f32 to vector<2x4x14xf32>
    %224 = arith.mulf %223, %20 : vector<2x4x14xf32>
    %225 = arith.addf %221, %224 : vector<2x4x14xf32>
    %c83 = arith.constant 83 : index
    %226 = memref.load %arg1[%c83] : memref<96xf32, #tpu.memory_space<smem>>
    %227 = vector.broadcast %226 : f32 to vector<2x4x14xf32>
    %228 = arith.mulf %227, %22 : vector<2x4x14xf32>
    %229 = arith.addf %225, %228 : vector<2x4x14xf32>
    %c91 = arith.constant 91 : index
    %230 = memref.load %arg1[%c91] : memref<96xf32, #tpu.memory_space<smem>>
    %231 = vector.broadcast %230 : f32 to vector<2x4x14xf32>
    %232 = arith.mulf %231, %24 : vector<2x4x14xf32>
    %233 = arith.addf %229, %232 : vector<2x4x14xf32>
    %c0_20 = arith.constant 0 : index
    %c3_21 = arith.constant 3 : index
    %c0_22 = arith.constant 0 : index
    %c0_23 = arith.constant 0 : index
    %234 = vector.load %arg4[%c0_20, %c3_21, %c0_22, %c0_23] : memref<2x8x4x14xf32, #tpu.memory_space<vmem>>, vector<2x1x4x14xf32>
    %235 = vector.shape_cast %234 : vector<2x1x4x14xf32> to vector<2x4x14xf32>
    %236 = vector.shape_cast %233 : vector<2x4x14xf32> to vector<2x1x4x14xf32>
    tpu.vector_store %arg4[%c0_20, %c3_21, %c0_22, %c0_23], %236 {strides = array<i32>} : memref<2x8x4x14xf32, #tpu.memory_space<vmem>>, vector<2x1x4x14xf32>,
    %c4 = arith.constant 4 : index
    %237 = memref.load %arg2[%c4] : memref<8xf32, #tpu.memory_space<smem>>
    %238 = vector.broadcast %237 : f32 to vector<2x4x14xf32>
    %c4_24 = arith.constant 4 : index
    %239 = memref.load %arg1[%c4_24] : memref<96xf32, #tpu.memory_space<smem>>
    %240 = vector.broadcast %239 : f32 to vector<2x4x14xf32>
    %241 = arith.mulf %240, %2 : vector<2x4x14xf32>
    %242 = arith.addf %238, %241 : vector<2x4x14xf32>
    %c12 = arith.constant 12 : index
    %243 = memref.load %arg1[%c12] : memref<96xf32, #tpu.memory_space<smem>>
    %244 = vector.broadcast %243 : f32 to vector<2x4x14xf32>
    %245 = arith.mulf %244, %4 : vector<2x4x14xf32>
    %246 = arith.addf %242, %245 : vector<2x4x14xf32>
    %c20 = arith.constant 20 : index
    %247 = memref.load %arg1[%c20] : memref<96xf32, #tpu.memory_space<smem>>
    %248 = vector.broadcast %247 : f32 to vector<2x4x14xf32>
    %249 = arith.mulf %248, %6 : vector<2x4x14xf32>
    %250 = arith.addf %246, %249 : vector<2x4x14xf32>
    %c28 = arith.constant 28 : index
    %251 = memref.load %arg1[%c28] : memref<96xf32, #tpu.memory_space<smem>>
    %252 = vector.broadcast %251 : f32 to vector<2x4x14xf32>
    %253 = arith.mulf %252, %8 : vector<2x4x14xf32>
    %254 = arith.addf %250, %253 : vector<2x4x14xf32>
    %c36 = arith.constant 36 : index
    %255 = memref.load %arg1[%c36] : memref<96xf32, #tpu.memory_space<smem>>
    %256 = vector.broadcast %255 : f32 to vector<2x4x14xf32>
    %257 = arith.mulf %256, %10 : vector<2x4x14xf32>
    %258 = arith.addf %254, %257 : vector<2x4x14xf32>
    %c44 = arith.constant 44 : index
    %259 = memref.load %arg1[%c44] : memref<96xf32, #tpu.memory_space<smem>>
    %260 = vector.broadcast %259 : f32 to vector<2x4x14xf32>
    %261 = arith.mulf %260, %12 : vector<2x4x14xf32>
    %262 = arith.addf %258, %261 : vector<2x4x14xf32>
    %c52 = arith.constant 52 : index
    %263 = memref.load %arg1[%c52] : memref<96xf32, #tpu.memory_space<smem>>
    %264 = vector.broadcast %263 : f32 to vector<2x4x14xf32>
    %265 = arith.mulf %264, %14 : vector<2x4x14xf32>
    %266 = arith.addf %262, %265 : vector<2x4x14xf32>
    %c60 = arith.constant 60 : index
    %267 = memref.load %arg1[%c60] : memref<96xf32, #tpu.memory_space<smem>>
    %268 = vector.broadcast %267 : f32 to vector<2x4x14xf32>
    %269 = arith.mulf %268, %16 : vector<2x4x14xf32>
    %270 = arith.addf %266, %269 : vector<2x4x14xf32>
    %c68 = arith.constant 68 : index
    %271 = memref.load %arg1[%c68] : memref<96xf32, #tpu.memory_space<smem>>
    %272 = vector.broadcast %271 : f32 to vector<2x4x14xf32>
    %273 = arith.mulf %272, %18 : vector<2x4x14xf32>
    %274 = arith.addf %270, %273 : vector<2x4x14xf32>
    %c76 = arith.constant 76 : index
    %275 = memref.load %arg1[%c76] : memref<96xf32, #tpu.memory_space<smem>>
    %276 = vector.broadcast %275 : f32 to vector<2x4x14xf32>
    %277 = arith.mulf %276, %20 : vector<2x4x14xf32>
    %278 = arith.addf %274, %277 : vector<2x4x14xf32>
    %c84 = arith.constant 84 : index
    %279 = memref.load %arg1[%c84] : memref<96xf32, #tpu.memory_space<smem>>
    %280 = vector.broadcast %279 : f32 to vector<2x4x14xf32>
    %281 = arith.mulf %280, %22 : vector<2x4x14xf32>
    %282 = arith.addf %278, %281 : vector<2x4x14xf32>
    %c92 = arith.constant 92 : index
    %283 = memref.load %arg1[%c92] : memref<96xf32, #tpu.memory_space<smem>>
    %284 = vector.broadcast %283 : f32 to vector<2x4x14xf32>
    %285 = arith.mulf %284, %24 : vector<2x4x14xf32>
    %286 = arith.addf %282, %285 : vector<2x4x14xf32>
    %c0_25 = arith.constant 0 : index
    %c4_26 = arith.constant 4 : index
    %c0_27 = arith.constant 0 : index
    %c0_28 = arith.constant 0 : index
    %287 = vector.load %arg4[%c0_25, %c4_26, %c0_27, %c0_28] : memref<2x8x4x14xf32, #tpu.memory_space<vmem>>, vector<2x1x4x14xf32>
    %288 = vector.shape_cast %287 : vector<2x1x4x14xf32> to vector<2x4x14xf32>
    %289 = vector.shape_cast %286 : vector<2x4x14xf32> to vector<2x1x4x14xf32>
    tpu.vector_store %arg4[%c0_25, %c4_26, %c0_27, %c0_28], %289 {strides = array<i32>} : memref<2x8x4x14xf32, #tpu.memory_space<vmem>>, vector<2x1x4x14xf32>,
    %c5 = arith.constant 5 : index
    %290 = memref.load %arg2[%c5] : memref<8xf32, #tpu.memory_space<smem>>
    %291 = vector.broadcast %290 : f32 to vector<2x4x14xf32>
    %c5_29 = arith.constant 5 : index
    %292 = memref.load %arg1[%c5_29] : memref<96xf32, #tpu.memory_space<smem>>
    %293 = vector.broadcast %292 : f32 to vector<2x4x14xf32>
    %294 = arith.mulf %293, %2 : vector<2x4x14xf32>
    %295 = arith.addf %291, %294 : vector<2x4x14xf32>
    %c13 = arith.constant 13 : index
    %296 = memref.load %arg1[%c13] : memref<96xf32, #tpu.memory_space<smem>>
    %297 = vector.broadcast %296 : f32 to vector<2x4x14xf32>
    %298 = arith.mulf %297, %4 : vector<2x4x14xf32>
    %299 = arith.addf %295, %298 : vector<2x4x14xf32>
    %c21 = arith.constant 21 : index
    %300 = memref.load %arg1[%c21] : memref<96xf32, #tpu.memory_space<smem>>
    %301 = vector.broadcast %300 : f32 to vector<2x4x14xf32>
    %302 = arith.mulf %301, %6 : vector<2x4x14xf32>
    %303 = arith.addf %299, %302 : vector<2x4x14xf32>
    %c29 = arith.constant 29 : index
    %304 = memref.load %arg1[%c29] : memref<96xf32, #tpu.memory_space<smem>>
    %305 = vector.broadcast %304 : f32 to vector<2x4x14xf32>
    %306 = arith.mulf %305, %8 : vector<2x4x14xf32>
    %307 = arith.addf %303, %306 : vector<2x4x14xf32>
    %c37 = arith.constant 37 : index
    %308 = memref.load %arg1[%c37] : memref<96xf32, #tpu.memory_space<smem>>
    %309 = vector.broadcast %308 : f32 to vector<2x4x14xf32>
    %310 = arith.mulf %309, %10 : vector<2x4x14xf32>
    %311 = arith.addf %307, %310 : vector<2x4x14xf32>
    %c45 = arith.constant 45 : index
    %312 = memref.load %arg1[%c45] : memref<96xf32, #tpu.memory_space<smem>>
    %313 = vector.broadcast %312 : f32 to vector<2x4x14xf32>
    %314 = arith.mulf %313, %12 : vector<2x4x14xf32>
    %315 = arith.addf %311, %314 : vector<2x4x14xf32>
    %c53 = arith.constant 53 : index
    %316 = memref.load %arg1[%c53] : memref<96xf32, #tpu.memory_space<smem>>
    %317 = vector.broadcast %316 : f32 to vector<2x4x14xf32>
    %318 = arith.mulf %317, %14 : vector<2x4x14xf32>
    %319 = arith.addf %315, %318 : vector<2x4x14xf32>
    %c61 = arith.constant 61 : index
    %320 = memref.load %arg1[%c61] : memref<96xf32, #tpu.memory_space<smem>>
    %321 = vector.broadcast %320 : f32 to vector<2x4x14xf32>
    %322 = arith.mulf %321, %16 : vector<2x4x14xf32>
    %323 = arith.addf %319, %322 : vector<2x4x14xf32>
    %c69 = arith.constant 69 : index
    %324 = memref.load %arg1[%c69] : memref<96xf32, #tpu.memory_space<smem>>
    %325 = vector.broadcast %324 : f32 to vector<2x4x14xf32>
    %326 = arith.mulf %325, %18 : vector<2x4x14xf32>
    %327 = arith.addf %323, %326 : vector<2x4x14xf32>
    %c77 = arith.constant 77 : index
    %328 = memref.load %arg1[%c77] : memref<96xf32, #tpu.memory_space<smem>>
    %329 = vector.broadcast %328 : f32 to vector<2x4x14xf32>
    %330 = arith.mulf %329, %20 : vector<2x4x14xf32>
    %331 = arith.addf %327, %330 : vector<2x4x14xf32>
    %c85 = arith.constant 85 : index
    %332 = memref.load %arg1[%c85] : memref<96xf32, #tpu.memory_space<smem>>
    %333 = vector.broadcast %332 : f32 to vector<2x4x14xf32>
    %334 = arith.mulf %333, %22 : vector<2x4x14xf32>
    %335 = arith.addf %331, %334 : vector<2x4x14xf32>
    %c93 = arith.constant 93 : index
    %336 = memref.load %arg1[%c93] : memref<96xf32, #tpu.memory_space<smem>>
    %337 = vector.broadcast %336 : f32 to vector<2x4x14xf32>
    %338 = arith.mulf %337, %24 : vector<2x4x14xf32>
    %339 = arith.addf %335, %338 : vector<2x4x14xf32>
    %c0_30 = arith.constant 0 : index
    %c5_31 = arith.constant 5 : index
    %c0_32 = arith.constant 0 : index
    %c0_33 = arith.constant 0 : index
    %340 = vector.load %arg4[%c0_30, %c5_31, %c0_32, %c0_33] : memref<2x8x4x14xf32, #tpu.memory_space<vmem>>, vector<2x1x4x14xf32>
    %341 = vector.shape_cast %340 : vector<2x1x4x14xf32> to vector<2x4x14xf32>
    %342 = vector.shape_cast %339 : vector<2x4x14xf32> to vector<2x1x4x14xf32>
    tpu.vector_store %arg4[%c0_30, %c5_31, %c0_32, %c0_33], %342 {strides = array<i32>} : memref<2x8x4x14xf32, #tpu.memory_space<vmem>>, vector<2x1x4x14xf32>,
    %c6 = arith.constant 6 : index
    %343 = memref.load %arg2[%c6] : memref<8xf32, #tpu.memory_space<smem>>
    %344 = vector.broadcast %343 : f32 to vector<2x4x14xf32>
    %c6_34 = arith.constant 6 : index
    %345 = memref.load %arg1[%c6_34] : memref<96xf32, #tpu.memory_space<smem>>
    %346 = vector.broadcast %345 : f32 to vector<2x4x14xf32>
    %347 = arith.mulf %346, %2 : vector<2x4x14xf32>
    %348 = arith.addf %344, %347 : vector<2x4x14xf32>
    %c14 = arith.constant 14 : index
    %349 = memref.load %arg1[%c14] : memref<96xf32, #tpu.memory_space<smem>>
    %350 = vector.broadcast %349 : f32 to vector<2x4x14xf32>
    %351 = arith.mulf %350, %4 : vector<2x4x14xf32>
    %352 = arith.addf %348, %351 : vector<2x4x14xf32>
    %c22 = arith.constant 22 : index
    %353 = memref.load %arg1[%c22] : memref<96xf32, #tpu.memory_space<smem>>
    %354 = vector.broadcast %353 : f32 to vector<2x4x14xf32>
    %355 = arith.mulf %354, %6 : vector<2x4x14xf32>
    %356 = arith.addf %352, %355 : vector<2x4x14xf32>
    %c30 = arith.constant 30 : index
    %357 = memref.load %arg1[%c30] : memref<96xf32, #tpu.memory_space<smem>>
    %358 = vector.broadcast %357 : f32 to vector<2x4x14xf32>
    %359 = arith.mulf %358, %8 : vector<2x4x14xf32>
    %360 = arith.addf %356, %359 : vector<2x4x14xf32>
    %c38 = arith.constant 38 : index
    %361 = memref.load %arg1[%c38] : memref<96xf32, #tpu.memory_space<smem>>
    %362 = vector.broadcast %361 : f32 to vector<2x4x14xf32>
    %363 = arith.mulf %362, %10 : vector<2x4x14xf32>
    %364 = arith.addf %360, %363 : vector<2x4x14xf32>
    %c46 = arith.constant 46 : index
    %365 = memref.load %arg1[%c46] : memref<96xf32, #tpu.memory_space<smem>>
    %366 = vector.broadcast %365 : f32 to vector<2x4x14xf32>
    %367 = arith.mulf %366, %12 : vector<2x4x14xf32>
    %368 = arith.addf %364, %367 : vector<2x4x14xf32>
    %c54 = arith.constant 54 : index
    %369 = memref.load %arg1[%c54] : memref<96xf32, #tpu.memory_space<smem>>
    %370 = vector.broadcast %369 : f32 to vector<2x4x14xf32>
    %371 = arith.mulf %370, %14 : vector<2x4x14xf32>
    %372 = arith.addf %368, %371 : vector<2x4x14xf32>
    %c62 = arith.constant 62 : index
    %373 = memref.load %arg1[%c62] : memref<96xf32, #tpu.memory_space<smem>>
    %374 = vector.broadcast %373 : f32 to vector<2x4x14xf32>
    %375 = arith.mulf %374, %16 : vector<2x4x14xf32>
    %376 = arith.addf %372, %375 : vector<2x4x14xf32>
    %c70 = arith.constant 70 : index
    %377 = memref.load %arg1[%c70] : memref<96xf32, #tpu.memory_space<smem>>
    %378 = vector.broadcast %377 : f32 to vector<2x4x14xf32>
    %379 = arith.mulf %378, %18 : vector<2x4x14xf32>
    %380 = arith.addf %376, %379 : vector<2x4x14xf32>
    %c78 = arith.constant 78 : index
    %381 = memref.load %arg1[%c78] : memref<96xf32, #tpu.memory_space<smem>>
    %382 = vector.broadcast %381 : f32 to vector<2x4x14xf32>
    %383 = arith.mulf %382, %20 : vector<2x4x14xf32>
    %384 = arith.addf %380, %383 : vector<2x4x14xf32>
    %c86 = arith.constant 86 : index
    %385 = memref.load %arg1[%c86] : memref<96xf32, #tpu.memory_space<smem>>
    %386 = vector.broadcast %385 : f32 to vector<2x4x14xf32>
    %387 = arith.mulf %386, %22 : vector<2x4x14xf32>
    %388 = arith.addf %384, %387 : vector<2x4x14xf32>
    %c94 = arith.constant 94 : index
    %389 = memref.load %arg1[%c94] : memref<96xf32, #tpu.memory_space<smem>>
    %390 = vector.broadcast %389 : f32 to vector<2x4x14xf32>
    %391 = arith.mulf %390, %24 : vector<2x4x14xf32>
    %392 = arith.addf %388, %391 : vector<2x4x14xf32>
    %c0_35 = arith.constant 0 : index
    %c6_36 = arith.constant 6 : index
    %c0_37 = arith.constant 0 : index
    %c0_38 = arith.constant 0 : index
    %393 = vector.load %arg4[%c0_35, %c6_36, %c0_37, %c0_38] : memref<2x8x4x14xf32, #tpu.memory_space<vmem>>, vector<2x1x4x14xf32>
    %394 = vector.shape_cast %393 : vector<2x1x4x14xf32> to vector<2x4x14xf32>
    %395 = vector.shape_cast %392 : vector<2x4x14xf32> to vector<2x1x4x14xf32>
    tpu.vector_store %arg4[%c0_35, %c6_36, %c0_37, %c0_38], %395 {strides = array<i32>} : memref<2x8x4x14xf32, #tpu.memory_space<vmem>>, vector<2x1x4x14xf32>,
    %c7 = arith.constant 7 : index
    %396 = memref.load %arg2[%c7] : memref<8xf32, #tpu.memory_space<smem>>
    %397 = vector.broadcast %396 : f32 to vector<2x4x14xf32>
    %c7_39 = arith.constant 7 : index
    %398 = memref.load %arg1[%c7_39] : memref<96xf32, #tpu.memory_space<smem>>
    %399 = vector.broadcast %398 : f32 to vector<2x4x14xf32>
    %400 = arith.mulf %399, %2 : vector<2x4x14xf32>
    %401 = arith.addf %397, %400 : vector<2x4x14xf32>
    %c15 = arith.constant 15 : index
    %402 = memref.load %arg1[%c15] : memref<96xf32, #tpu.memory_space<smem>>
    %403 = vector.broadcast %402 : f32 to vector<2x4x14xf32>
    %404 = arith.mulf %403, %4 : vector<2x4x14xf32>
    %405 = arith.addf %401, %404 : vector<2x4x14xf32>
    %c23 = arith.constant 23 : index
    %406 = memref.load %arg1[%c23] : memref<96xf32, #tpu.memory_space<smem>>
    %407 = vector.broadcast %406 : f32 to vector<2x4x14xf32>
    %408 = arith.mulf %407, %6 : vector<2x4x14xf32>
    %409 = arith.addf %405, %408 : vector<2x4x14xf32>
    %c31 = arith.constant 31 : index
    %410 = memref.load %arg1[%c31] : memref<96xf32, #tpu.memory_space<smem>>
    %411 = vector.broadcast %410 : f32 to vector<2x4x14xf32>
    %412 = arith.mulf %411, %8 : vector<2x4x14xf32>
    %413 = arith.addf %409, %412 : vector<2x4x14xf32>
    %c39 = arith.constant 39 : index
    %414 = memref.load %arg1[%c39] : memref<96xf32, #tpu.memory_space<smem>>
    %415 = vector.broadcast %414 : f32 to vector<2x4x14xf32>
    %416 = arith.mulf %415, %10 : vector<2x4x14xf32>
    %417 = arith.addf %413, %416 : vector<2x4x14xf32>
    %c47 = arith.constant 47 : index
    %418 = memref.load %arg1[%c47] : memref<96xf32, #tpu.memory_space<smem>>
    %419 = vector.broadcast %418 : f32 to vector<2x4x14xf32>
    %420 = arith.mulf %419, %12 : vector<2x4x14xf32>
    %421 = arith.addf %417, %420 : vector<2x4x14xf32>
    %c55 = arith.constant 55 : index
    %422 = memref.load %arg1[%c55] : memref<96xf32, #tpu.memory_space<smem>>
    %423 = vector.broadcast %422 : f32 to vector<2x4x14xf32>
    %424 = arith.mulf %423, %14 : vector<2x4x14xf32>
    %425 = arith.addf %421, %424 : vector<2x4x14xf32>
    %c63 = arith.constant 63 : index
    %426 = memref.load %arg1[%c63] : memref<96xf32, #tpu.memory_space<smem>>
    %427 = vector.broadcast %426 : f32 to vector<2x4x14xf32>
    %428 = arith.mulf %427, %16 : vector<2x4x14xf32>
    %429 = arith.addf %425, %428 : vector<2x4x14xf32>
    %c71 = arith.constant 71 : index
    %430 = memref.load %arg1[%c71] : memref<96xf32, #tpu.memory_space<smem>>
    %431 = vector.broadcast %430 : f32 to vector<2x4x14xf32>
    %432 = arith.mulf %431, %18 : vector<2x4x14xf32>
    %433 = arith.addf %429, %432 : vector<2x4x14xf32>
    %c79 = arith.constant 79 : index
    %434 = memref.load %arg1[%c79] : memref<96xf32, #tpu.memory_space<smem>>
    %435 = vector.broadcast %434 : f32 to vector<2x4x14xf32>
    %436 = arith.mulf %435, %20 : vector<2x4x14xf32>
    %437 = arith.addf %433, %436 : vector<2x4x14xf32>
    %c87 = arith.constant 87 : index
    %438 = memref.load %arg1[%c87] : memref<96xf32, #tpu.memory_space<smem>>
    %439 = vector.broadcast %438 : f32 to vector<2x4x14xf32>
    %440 = arith.mulf %439, %22 : vector<2x4x14xf32>
    %441 = arith.addf %437, %440 : vector<2x4x14xf32>
    %c95 = arith.constant 95 : index
    %442 = memref.load %arg1[%c95] : memref<96xf32, #tpu.memory_space<smem>>
    %443 = vector.broadcast %442 : f32 to vector<2x4x14xf32>
    %444 = arith.mulf %443, %24 : vector<2x4x14xf32>
    %445 = arith.addf %441, %444 : vector<2x4x14xf32>
    %c0_40 = arith.constant 0 : index
    %c7_41 = arith.constant 7 : index
    %c0_42 = arith.constant 0 : index
    %c0_43 = arith.constant 0 : index
    %446 = vector.load %arg4[%c0_40, %c7_41, %c0_42, %c0_43] : memref<2x8x4x14xf32, #tpu.memory_space<vmem>>, vector<2x1x4x14xf32>
    %447 = vector.shape_cast %446 : vector<2x1x4x14xf32> to vector<2x4x14xf32>
    %448 = vector.shape_cast %445 : vector<2x4x14xf32> to vector<2x1x4x14xf32>
    tpu.vector_store %arg4[%c0_40, %c7_41, %c0_42, %c0_43], %448 {strides = array<i32>} : memref<2x8x4x14xf32, #tpu.memory_space<vmem>>, vector<2x1x4x14xf32>,
    return
  }
  func.func @transform_0(%arg0: i32) -> i32 {
    %c0_i32 = arith.constant 0 : i32
    %c0_i32_0 = arith.constant 0 : i32
    return %c0_i32 : i32
  }
  func.func @transform_1(%arg0: i32) -> i32 {
    %c0_i32 = arith.constant 0 : i32
    %c0_i32_0 = arith.constant 0 : i32
    return %c0_i32 : i32
  }
  func.func @transform_2(%arg0: i32) -> (i32, i32, i32, i32) {
    %c0_i32 = arith.constant 0 : i32
    %c0_i32_0 = arith.constant 0 : i32
    %c0_i32_1 = arith.constant 0 : i32
    %c0_i32_2 = arith.constant 0 : i32
    return %arg0, %c0_i32, %c0_i32_0, %c0_i32_1 : i32, i32, i32, i32
  }
  func.func @transform_3(%arg0: i32) -> (i32, i32, i32, i32) {
    %c0_i32 = arith.constant 0 : i32
    %c0_i32_0 = arith.constant 0 : i32
    %c0_i32_1 = arith.constant 0 : i32
    %c0_i32_2 = arith.constant 0 : i32
    return %arg0, %c0_i32, %c0_i32_0, %c0_i32_1 : i32, i32, i32, i32
  }
}

</mosaic_0001>

<llo_original>
// kernel: tpu_custom_call.1
$region0: #{tpu_custom_call.1}
  #allocation0 [shape = 'u32[]', space=smem, size = 0x4, offset = 0x4, fixed_abs, tag = 'smem constant byte address 0x4 - core index']
  #allocation1 [shape = 'u32[72,128]{1,0:T(1,128)}', space=vmem, size = 0x9000, scoped, tag = 'internal scratch']
  %s0 = inlined_call_operand.hbm [shape: f32[96], index: 0, kind: input, shape index: {}]
  %s1 = inlined_call_operand.hbm [shape: f32[8], index: 1, kind: input, shape index: {}]
  %s2 = inlined_call_operand.hbm [shape: f32[2,4,4,16], index: 2, kind: input, shape index: {}]
  %s3 = inlined_call_operand.hbm [shape: f32[2,8,4,14], index: 3, kind: output, shape index: {}]
  %s4 = sld [smem:[#allocation0]]
  $region34: #{tpu_custom_call.1} parent=0
    _
  %s6 = ssub.s32 1, %s4
  %s7 = scalar_select 0, %s6, %s4
  $region1: #{tpu_custom_call.1} parent=0
    #allocation2 [shape = 'u8[512]{0}', space=smem, size = 0x200, scoped, tag = 'input window, operand 0, single buffered']
    #allocation3 [shape = 's32[1]{0}', space=sflag, size = 0x4, scoped, tag = 'scoped memory for tpu_custom_call.1']
    #allocation4 [shape = 's32[1]{0}', space=sflag, size = 0x4, scoped, tag = 'scoped memory for tpu_custom_call.1']
    #allocation5 [shape = 's32[1]{0}', space=sflag, size = 0x4, scoped, tag = 'scoped memory for tpu_custom_call.1']
    #allocation6 [shape = 'u8[512]{0}', space=smem, size = 0x200, scoped, tag = 'input window, operand 1, single buffered']
    #allocation7 [shape = 's32[1]{0}', space=sflag, size = 0x4, scoped, tag = 'scoped memory for tpu_custom_call.1']
    #allocation8 [shape = 'u8[16384]{0}', space=vmem, size = 0x4000, scoped, tag = 'input window, operand 2, single buffered']
    #allocation9 [shape = 'u8[32768]{0}', space=vmem, size = 0x8000, scoped, tag = 'output window, operand 0, single buffered']
    %8 = vsyncpa [#allocation5], 0
    %9 = vsyncpa [#allocation7], 0
    %10 = vsyncpa [#allocation3], 0
    %11 = vsyncpa [#allocation4], 0
    // Predicated region
    $region2: #{tpu_custom_call.1} parent=1 // pred_check
      _
    $region3: #{tpu_custom_call.1} parent=1 // pred_check_branch
      %13 = sbr.rel (0) target = $region5
    $region4: #{tpu_custom_call.1} parent=1 // pred_region
      %15 = vsyncadd [#allocation5], 0
      %s17 = sshll.u32 %s0, 4
      %s18 = int_to_ptr.hbm [resolvable:$true] %s17
      %20 = dma.hbm_to_smem %s18, 16, [#allocation2], [#allocation5]
    $region5: #{tpu_custom_call.1} parent=1 // pred_fallthru
      _
    // Predicated region
    $region6: #{tpu_custom_call.1} parent=1 // pred_check
      _
    $region7: #{tpu_custom_call.1} parent=1 // pred_check_branch
      %22 = sbr.rel (0) target = $region9
    $region8: #{tpu_custom_call.1} parent=1 // pred_region
      %24 = vsyncadd [#allocation7], 0
      %s26 = sshll.u32 %s1, 4
      %s27 = int_to_ptr.hbm [resolvable:$true] %s26
      %29 = dma.hbm_to_smem %s27, 16, [#allocation6], [#allocation7]
    $region9: #{tpu_custom_call.1} parent=1 // pred_fallthru
      _
    // Predicated region
    $region10: #{tpu_custom_call.1} parent=1 // pred_check
      _
    $region11: #{tpu_custom_call.1} parent=1 // pred_check_branch
      %31 = sbr.rel (0) target = $region13
    $region12: #{tpu_custom_call.1} parent=1 // pred_region
      %33 = vsyncadd [#allocation3], 0
      %s34 = sshll.u32 %s2, 4
      %s35 = int_to_ptr.hbm [resolvable:$true] %s34
      %s36 = sshll.u32 [#allocation8], 4
      %s37 = int_to_ptr.vmem [resolvable:$true] %s36
      %42 = dma.hbm_to_vmem [thread:$0]  %s35, 512, %s37, [#allocation3], 64, 64, 4
    $region13: #{tpu_custom_call.1} parent=1 // pred_fallthru
      _
    // Predicated region
    $region14: #{tpu_custom_call.1} parent=1 // pred_check
      _
    $region15: #{tpu_custom_call.1} parent=1 // pred_check_branch
      %44 = sbr.rel (0) target = $region17
    $region16: #{tpu_custom_call.1} parent=1 // pred_region
      %46 = dma.done [#allocation5], 16
    $region17: #{tpu_custom_call.1} parent=1 // pred_fallthru
      _
    // Predicated region
    $region18: #{tpu_custom_call.1} parent=1 // pred_check
      _
    $region19: #{tpu_custom_call.1} parent=1 // pred_check_branch
      %48 = sbr.rel (0) target = $region21
    $region20: #{tpu_custom_call.1} parent=1 // pred_region
      %50 = dma.done [#allocation7], 16
    $region21: #{tpu_custom_call.1} parent=1 // pred_fallthru
      _
    // Predicated region
    $region22: #{tpu_custom_call.1} parent=1 // pred_check
      _
    $region23: #{tpu_custom_call.1} parent=1 // pred_check_branch
      %52 = sbr.rel (0) target = $region25
    $region24: #{tpu_custom_call.1} parent=1 // pred_region
      %54 = dma.done [#allocation3], 512
    $region25: #{tpu_custom_call.1} parent=1 // pred_fallthru
      _
    %55 = sfence
    %v56 = vld [vmem:[#allocation8] sm:$0xf]
    %v57 = vld [vmem:[#allocation8 + $0x4] sm:$0xf]
    %v58 = vld [vmem:[#allocation8 + $0x8] sm:$0xf]
    %v59 = vld [vmem:[#allocation8 + $0xc] sm:$0xf]
    %v60 = vld [vmem:[#allocation8 + $0x10] sm:$0xf]
    %v61 = vld [vmem:[#allocation8 + $0x14] sm:$0xf]
    %v62 = vld [vmem:[#allocation8 + $0x18] sm:$0xf]
    %v63 = vld [vmem:[#allocation8 + $0x1c] sm:$0xf]
    %s64 = sld [smem:[#allocation6]]
    %v65 = vstv %s64
    %s66 = sld [smem:[#allocation2]]
    %v67 = vstv %s66
    %v68 = vmul.f32 %v67, %v56
    %v69 = vmul.f32 %v67, %v60
    %v70 = vadd.f32 %v65, %v68
    %v71 = vadd.f32 %v65, %v69
    %s72 = sld [smem:[#allocation2 + $0x8]]
    %v73 = vstv %s72
    %v74 = vmul.f32 %v73, %v56
    %v75 = vmul.f32 %v73, %v60
    %78 = vrot.lane.b32.xlu0 %v74, 127
    %v79 = vpop.permute.xlu0 %78
    %80 = vrot.lane.b32.xlu0 %v75, 127
    %v81 = vpop.permute.xlu0 %80
    %v84 = vadd.f32 %v70, %v79
    %v85 = vadd.f32 %v71, %v81
    %s86 = sld [smem:[#allocation2 + $0x10]]
    %v87 = vstv %s86
    %v88 = vmul.f32 %v87, %v56
    %v89 = vmul.f32 %v87, %v60
    %92 = vrot.lane.b32.xlu0 %v88, 126
    %v93 = vpop.permute.xlu0 %92
    %94 = vrot.lane.b32.xlu0 %v89, 126
    %v95 = vpop.permute.xlu0 %94
    %v98 = vadd.f32 %v84, %v93
    %v99 = vadd.f32 %v85, %v95
    %s100 = sld [smem:[#allocation2 + $0x18]]
    %v101 = vstv %s100
    %v102 = vmul.f32 %v101, %v57
    %v103 = vmul.f32 %v101, %v61
    %v104 = vadd.f32 %v98, %v102
    %v105 = vadd.f32 %v99, %v103
    %s106 = sld [smem:[#allocation2 + $0x20]]
    %v107 = vstv %s106
    %v108 = vmul.f32 %v107, %v57
    %v109 = vmul.f32 %v107, %v61
    %112 = vrot.lane.b32.xlu0 %v108, 127
    %v113 = vpop.permute.xlu0 %112
    %114 = vrot.lane.b32.xlu0 %v109, 127
    %v115 = vpop.permute.xlu0 %114
    %v118 = vadd.f32 %v104, %v113
    %v119 = vadd.f32 %v105, %v115
    %s120 = sld [smem:[#allocation2 + $0x28]]
    %v121 = vstv %s120
    %v122 = vmul.f32 %v121, %v57
    %v123 = vmul.f32 %v121, %v61
    %126 = vrot.lane.b32.xlu0 %v122, 126
    %v127 = vpop.permute.xlu0 %126
    %128 = vrot.lane.b32.xlu0 %v123, 126
    %v129 = vpop.permute.xlu0 %128
    %v132 = vadd.f32 %v118, %v127
    %v133 = vadd.f32 %v119, %v129
    %s134 = sld [smem:[#allocation2 + $0x30]]
    %v135 = vstv %s134
    %v136 = vmul.f32 %v135, %v58
    %v137 = vmul.f32 %v135, %v62
    %v138 = vadd.f32 %v132, %v136
    %v139 = vadd.f32 %v133, %v137
    %s140 = sld [smem:[#allocation2 + $0x38]]
    %v141 = vstv %s140
    %v142 = vmul.f32 %v141, %v58
    %v143 = vmul.f32 %v141, %v62
    %146 = vrot.lane.b32.xlu0 %v142, 127
    %v147 = vpop.permute.xlu0 %146
    %148 = vrot.lane.b32.xlu0 %v143, 127
    %v149 = vpop.permute.xlu0 %148
    %v152 = vadd.f32 %v138, %v147
    %v153 = vadd.f32 %v139, %v149
    %s154 = sld [smem:[#allocation2 + $0x40]]
    %v155 = vstv %s154
    %v156 = vmul.f32 %v155, %v58
    %v157 = vmul.f32 %v155, %v62
    %160 = vrot.lane.b32.xlu0 %v156, 126
    %v161 = vpop.permute.xlu0 %160
    %162 = vrot.lane.b32.xlu0 %v157, 126
    %v163 = vpop.permute.xlu0 %162
    %v166 = vadd.f32 %v152, %v161
    %v167 = vadd.f32 %v153, %v163
    %s168 = sld [smem:[#allocation2 + $0x48]]
    %v169 = vstv %s168
    %v170 = vmul.f32 %v169, %v59
    %v171 = vmul.f32 %v169, %v63
    %v172 = vadd.f32 %v166, %v170
    %v173 = vadd.f32 %v167, %v171
    %s174 = sld [smem:[#allocation2 + $0x50]]
    %v175 = vstv %s174
    %v176 = vmul.f32 %v175, %v59
    %v177 = vmul.f32 %v175, %v63
    %180 = vrot.lane.b32.xlu0 %v176, 127
    %v181 = vpop.permute.xlu0 %180
    %182 = vrot.lane.b32.xlu0 %v177, 127
    %v183 = vpop.permute.xlu0 %182
    %v186 = vadd.f32 %v172, %v181
    %v187 = vadd.f32 %v173, %v183
    %s188 = sld [smem:[#allocation2 + $0x58]]
    %v189 = vstv %s188
    %v190 = vmul.f32 %v189, %v59
    %v191 = vmul.f32 %v189, %v63
    %194 = vrot.lane.b32.xlu0 %v190, 126
    %v195 = vpop.permute.xlu0 %194
    %196 = vrot.lane.b32.xlu0 %v191, 126
    %v197 = vpop.permute.xlu0 %196
    %v200 = vadd.f32 %v186, %v195
    %v201 = vadd.f32 %v187, %v197
    %vm202 = vcmask 109568
    %203 = vst.msk [vmem:[#allocation9] sm:$0xf] %vm202, %v200
    %204 = vst.msk [vmem:[#allocation9 + $0x20] sm:$0xf] %vm202, %v201
    %s205 = sld [smem:[#allocation6 + $0x1]]
    %v206 = vstv %s205
    %s207 = sld [smem:[#allocation2 + $0x1]]
    %v208 = vstv %s207
    %v209 = vmul.f32 %v208, %v56
    %v210 = vmul.f32 %v208, %v60
    %v211 = vadd.f32 %v206, %v209
    %v212 = vadd.f32 %v206, %v210
    %s213 = sld [smem:[#allocation2 + $0x9]]
    %v214 = vstv %s213
    %v215 = vmul.f32 %v214, %v56
    %v216 = vmul.f32 %v214, %v60
    %219 = vrot.lane.b32.xlu0 %v215, 127
    %v220 = vpop.permute.xlu0 %219
    %221 = vrot.lane.b32.xlu0 %v216, 127
    %v222 = vpop.permute.xlu0 %221
    %v225 = vadd.f32 %v211, %v220
    %v226 = vadd.f32 %v212, %v222
    %s227 = sld [smem:[#allocation2 + $0x11]]
    %v228 = vstv %s227
    %v229 = vmul.f32 %v228, %v56
    %v230 = vmul.f32 %v228, %v60
    %233 = vrot.lane.b32.xlu0 %v229, 126
    %v234 = vpop.permute.xlu0 %233
    %235 = vrot.lane.b32.xlu0 %v230, 126
    %v236 = vpop.permute.xlu0 %235
    %v239 = vadd.f32 %v225, %v234
    %v240 = vadd.f32 %v226, %v236
    %s241 = sld [smem:[#allocation2 + $0x19]]
    %v242 = vstv %s241
    %v243 = vmul.f32 %v242, %v57
    %v244 = vmul.f32 %v242, %v61
    %v245 = vadd.f32 %v239, %v243
    %v246 = vadd.f32 %v240, %v244
    %s247 = sld [smem:[#allocation2 + $0x21]]
    %v248 = vstv %s247
    %v249 = vmul.f32 %v248, %v57
    %v250 = vmul.f32 %v248, %v61
    %253 = vrot.lane.b32.xlu0 %v249, 127
    %v254 = vpop.permute.xlu0 %253
    %255 = vrot.lane.b32.xlu0 %v250, 127
    %v256 = vpop.permute.xlu0 %255
    %v259 = vadd.f32 %v245, %v254
    %v260 = vadd.f32 %v246, %v256
    %s261 = sld [smem:[#allocation2 + $0x29]]
    %v262 = vstv %s261
    %v263 = vmul.f32 %v262, %v57
    %v264 = vmul.f32 %v262, %v61
    %267 = vrot.lane.b32.xlu0 %v263, 126
    %v268 = vpop.permute.xlu0 %267
    %269 = vrot.lane.b32.xlu0 %v264, 126
    %v270 = vpop.permute.xlu0 %269
    %v273 = vadd.f32 %v259, %v268
    %v274 = vadd.f32 %v260, %v270
    %s275 = sld [smem:[#allocation2 + $0x31]]
    %v276 = vstv %s275
    %v277 = vmul.f32 %v276, %v58
    %v278 = vmul.f32 %v276, %v62
    %v279 = vadd.f32 %v273, %v277
    %v280 = vadd.f32 %v274, %v278
    %s281 = sld [smem:[#allocation2 + $0x39]]
    %v282 = vstv %s281
    %v283 = vmul.f32 %v282, %v58
    %v284 = vmul.f32 %v282, %v62
    %287 = vrot.lane.b32.xlu0 %v283, 127
    %v288 = vpop.permute.xlu0 %287
    %289 = vrot.lane.b32.xlu0 %v284, 127
    %v290 = vpop.permute.xlu0 %289
    %v293 = vadd.f32 %v279, %v288
    %v294 = vadd.f32 %v280, %v290
    %s295 = sld [smem:[#allocation2 + $0x41]]
    %v296 = vstv %s295
    %v297 = vmul.f32 %v296, %v58
    %v298 = vmul.f32 %v296, %v62
    %301 = vrot.lane.b32.xlu0 %v297, 126
    %v302 = vpop.permute.xlu0 %301
    %303 = vrot.lane.b32.xlu0 %v298, 126
    %v304 = vpop.permute.xlu0 %303
    %v307 = vadd.f32 %v293, %v302
    %v308 = vadd.f32 %v294, %v304
    %s309 = sld [smem:[#allocation2 + $0x49]]
    %v310 = vstv %s309
    %v311 = vmul.f32 %v310, %v59
    %v312 = vmul.f32 %v310, %v63
    %v313 = vadd.f32 %v307, %v311
    %v314 = vadd.f32 %v308, %v312
    %s315 = sld [smem:[#allocation2 + $0x51]]
    %v316 = vstv %s315
    %v317 = vmul.f32 %v316, %v59
    %v318 = vmul.f32 %v316, %v63
    %321 = vrot.lane.b32.xlu0 %v317, 127
    %v322 = vpop.permute.xlu0 %321
    %323 = vrot.lane.b32.xlu0 %v318, 127
    %v324 = vpop.permute.xlu0 %323
    %v327 = vadd.f32 %v313, %v322
    %v328 = vadd.f32 %v314, %v324
    %s329 = sld [smem:[#allocation2 + $0x59]]
    %v330 = vstv %s329
    %v331 = vmul.f32 %v330, %v59
    %v332 = vmul.f32 %v330, %v63
    %335 = vrot.lane.b32.xlu0 %v331, 126
    %v336 = vpop.permute.xlu0 %335
    %337 = vrot.lane.b32.xlu0 %v332, 126
    %v338 = vpop.permute.xlu0 %337
    %v341 = vadd.f32 %v327, %v336
    %v342 = vadd.f32 %v328, %v338
    %s343 = scalar_lea.vmem [#allocation9], 4
    %344 = vst.msk [vmem:[%s343] sm:$0xf] %vm202, %v341
    %345 = vst.msk [vmem:[%s343 + $0x20] sm:$0xf] %vm202, %v342
    %s346 = sld [smem:[#allocation6 + $0x2]]
    %v347 = vstv %s346
    %s348 = sld [smem:[#allocation2 + $0x2]]
    %v349 = vstv %s348
    %v350 = vmul.f32 %v349, %v56
    %v351 = vmul.f32 %v349, %v60
    %v352 = vadd.f32 %v347, %v350
    %v353 = vadd.f32 %v347, %v351
    %s354 = sld [smem:[#allocation2 + $0xa]]
    %v355 = vstv %s354
    %v356 = vmul.f32 %v355, %v56
    %v357 = vmul.f32 %v355, %v60
    %360 = vrot.lane.b32.xlu0 %v356, 127
    %v361 = vpop.permute.xlu0 %360
    %362 = vrot.lane.b32.xlu0 %v357, 127
    %v363 = vpop.permute.xlu0 %362
    %v366 = vadd.f32 %v352, %v361
    %v367 = vadd.f32 %v353, %v363
    %s368 = sld [smem:[#allocation2 + $0x12]]
    %v369 = vstv %s368
    %v370 = vmul.f32 %v369, %v56
    %v371 = vmul.f32 %v369, %v60
    %374 = vrot.lane.b32.xlu0 %v370, 126
    %v375 = vpop.permute.xlu0 %374
    %376 = vrot.lane.b32.xlu0 %v371, 126
    %v377 = vpop.permute.xlu0 %376
    %v380 = vadd.f32 %v366, %v375
    %v381 = vadd.f32 %v367, %v377
    %s382 = sld [smem:[#allocation2 + $0x1a]]
    %v383 = vstv %s382
    %v384 = vmul.f32 %v383, %v57
    %v385 = vmul.f32 %v383, %v61
    %v386 = vadd.f32 %v380, %v384
    %v387 = vadd.f32 %v381, %v385
    %s388 = sld [smem:[#allocation2 + $0x22]]
    %v389 = vstv %s388
    %v390 = vmul.f32 %v389, %v57
    %v391 = vmul.f32 %v389, %v61
    %394 = vrot.lane.b32.xlu0 %v390, 127
    %v395 = vpop.permute.xlu0 %394
    %396 = vrot.lane.b32.xlu0 %v391, 127
    %v397 = vpop.permute.xlu0 %396
    %v400 = vadd.f32 %v386, %v395
    %v401 = vadd.f32 %v387, %v397
    %s402 = sld [smem:[#allocation2 + $0x2a]]
    %v403 = vstv %s402
    %v404 = vmul.f32 %v403, %v57
    %v405 = vmul.f32 %v403, %v61
    %408 = vrot.lane.b32.xlu0 %v404, 126
    %v409 = vpop.permute.xlu0 %408
    %410 = vrot.lane.b32.xlu0 %v405, 126
    %v411 = vpop.permute.xlu0 %410
    %v414 = vadd.f32 %v400, %v409
    %v415 = vadd.f32 %v401, %v411
    %s416 = sld [smem:[#allocation2 + $0x32]]
    %v417 = vstv %s416
    %v418 = vmul.f32 %v417, %v58
    %v419 = vmul.f32 %v417, %v62
    %v420 = vadd.f32 %v414, %v418
    %v421 = vadd.f32 %v415, %v419
    %s422 = sld [smem:[#allocation2 + $0x3a]]
    %v423 = vstv %s422
    %v424 = vmul.f32 %v423, %v58
    %v425 = vmul.f32 %v423, %v62
    %428 = vrot.lane.b32.xlu0 %v424, 127
    %v429 = vpop.permute.xlu0 %428
    %430 = vrot.lane.b32.xlu0 %v425, 127
    %v431 = vpop.permute.xlu0 %430
    %v434 = vadd.f32 %v420, %v429
    %v435 = vadd.f32 %v421, %v431
    %s436 = sld [smem:[#allocation2 + $0x42]]
    %v437 = vstv %s436
    %v438 = vmul.f32 %v437, %v58
    %v439 = vmul.f32 %v437, %v62
    %442 = vrot.lane.b32.xlu0 %v438, 126
    %v443 = vpop.permute.xlu0 %442
    %444 = vrot.lane.b32.xlu0 %v439, 126
    %v445 = vpop.permute.xlu0 %444
    %v448 = vadd.f32 %v434, %v443
    %v449 = vadd.f32 %v435, %v445
    %s450 = sld [smem:[#allocation2 + $0x4a]]
    %v451 = vstv %s450
    %v452 = vmul.f32 %v451, %v59
    %v453 = vmul.f32 %v451, %v63
    %v454 = vadd.f32 %v448, %v452
    %v455 = vadd.f32 %v449, %v453
    %s456 = sld [smem:[#allocation2 + $0x52]]
    %v457 = vstv %s456
    %v458 = vmul.f32 %v457, %v59
    %v459 = vmul.f32 %v457, %v63
    %462 = vrot.lane.b32.xlu0 %v458, 127
    %v463 = vpop.permute.xlu0 %462
    %464 = vrot.lane.b32.xlu0 %v459, 127
    %v465 = vpop.permute.xlu0 %464
    %v468 = vadd.f32 %v454, %v463
    %v469 = vadd.f32 %v455, %v465
    %s470 = sld [smem:[#allocation2 + $0x5a]]
    %v471 = vstv %s470
    %v472 = vmul.f32 %v471, %v59
    %v473 = vmul.f32 %v471, %v63
    %476 = vrot.lane.b32.xlu0 %v472, 126
    %v477 = vpop.permute.xlu0 %476
    %478 = vrot.lane.b32.xlu0 %v473, 126
    %v479 = vpop.permute.xlu0 %478
    %v482 = vadd.f32 %v468, %v477
    %v483 = vadd.f32 %v469, %v479
    %s484 = scalar_lea.vmem [#allocation9], 8
    %485 = vst.msk [vmem:[%s484] sm:$0xf] %vm202, %v482
    %486 = vst.msk [vmem:[%s484 + $0x20] sm:$0xf] %vm202, %v483
    %s487 = sld [smem:[#allocation6 + $0x3]]
    %v488 = vstv %s487
    %s489 = sld [smem:[#allocation2 + $0x3]]
    %v490 = vstv %s489
    %v491 = vmul.f32 %v490, %v56
    %v492 = vmul.f32 %v490, %v60
    %v493 = vadd.f32 %v488, %v491
    %v494 = vadd.f32 %v488, %v492
    %s495 = sld [smem:[#allocation2 + $0xb]]
    %v496 = vstv %s495
    %v497 = vmul.f32 %v496, %v56
    %v498 = vmul.f32 %v496, %v60
    %501 = vrot.lane.b32.xlu0 %v497, 127
    %v502 = vpop.permute.xlu0 %501
    %503 = vrot.lane.b32.xlu0 %v498, 127
    %v504 = vpop.permute.xlu0 %503
    %v507 = vadd.f32 %v493, %v502
    %v508 = vadd.f32 %v494, %v504
    %s509 = sld [smem:[#allocation2 + $0x13]]
    %v510 = vstv %s509
    %v511 = vmul.f32 %v510, %v56
    %v512 = vmul.f32 %v510, %v60
    %515 = vrot.lane.b32.xlu0 %v511, 126
    %v516 = vpop.permute.xlu0 %515
    %517 = vrot.lane.b32.xlu0 %v512, 126
    %v518 = vpop.permute.xlu0 %517
    %v521 = vadd.f32 %v507, %v516
    %v522 = vadd.f32 %v508, %v518
    %s523 = sld [smem:[#allocation2 + $0x1b]]
    %v524 = vstv %s523
    %v525 = vmul.f32 %v524, %v57
    %v526 = vmul.f32 %v524, %v61
    %v527 = vadd.f32 %v521, %v525
    %v528 = vadd.f32 %v522, %v526
    %s529 = sld [smem:[#allocation2 + $0x23]]
    %v530 = vstv %s529
    %v531 = vmul.f32 %v530, %v57
    %v532 = vmul.f32 %v530, %v61
    %535 = vrot.lane.b32.xlu0 %v531, 127
    %v536 = vpop.permute.xlu0 %535
    %537 = vrot.lane.b32.xlu0 %v532, 127
    %v538 = vpop.permute.xlu0 %537
    %v541 = vadd.f32 %v527, %v536
    %v542 = vadd.f32 %v528, %v538
    %s543 = sld [smem:[#allocation2 + $0x2b]]
    %v544 = vstv %s543
    %v545 = vmul.f32 %v544, %v57
    %v546 = vmul.f32 %v544, %v61
    %549 = vrot.lane.b32.xlu0 %v545, 126
    %v550 = vpop.permute.xlu0 %549
    %551 = vrot.lane.b32.xlu0 %v546, 126
    %v552 = vpop.permute.xlu0 %551
    %v555 = vadd.f32 %v541, %v550
    %v556 = vadd.f32 %v542, %v552
    %s557 = sld [smem:[#allocation2 + $0x33]]
    %v558 = vstv %s557
    %v559 = vmul.f32 %v558, %v58
    %v560 = vmul.f32 %v558, %v62
    %v561 = vadd.f32 %v555, %v559
    %v562 = vadd.f32 %v556, %v560
    %s563 = sld [smem:[#allocation2 + $0x3b]]
    %v564 = vstv %s563
    %v565 = vmul.f32 %v564, %v58
    %v566 = vmul.f32 %v564, %v62
    %569 = vrot.lane.b32.xlu0 %v565, 127
    %v570 = vpop.permute.xlu0 %569
    %571 = vrot.lane.b32.xlu0 %v566, 127
    %v572 = vpop.permute.xlu0 %571
    %v575 = vadd.f32 %v561, %v570
    %v576 = vadd.f32 %v562, %v572
    %s577 = sld [smem:[#allocation2 + $0x43]]
    %v578 = vstv %s577
    %v579 = vmul.f32 %v578, %v58
    %v580 = vmul.f32 %v578, %v62
    %583 = vrot.lane.b32.xlu0 %v579, 126
    %v584 = vpop.permute.xlu0 %583
    %585 = vrot.lane.b32.xlu0 %v580, 126
    %v586 = vpop.permute.xlu0 %585
    %v589 = vadd.f32 %v575, %v584
    %v590 = vadd.f32 %v576, %v586
    %s591 = sld [smem:[#allocation2 + $0x4b]]
    %v592 = vstv %s591
    %v593 = vmul.f32 %v592, %v59
    %v594 = vmul.f32 %v592, %v63
    %v595 = vadd.f32 %v589, %v593
    %v596 = vadd.f32 %v590, %v594
    %s597 = sld [smem:[#allocation2 + $0x53]]
    %v598 = vstv %s597
    %v599 = vmul.f32 %v598, %v59
    %v600 = vmul.f32 %v598, %v63
    %603 = vrot.lane.b32.xlu0 %v599, 127
    %v604 = vpop.permute.xlu0 %603
    %605 = vrot.lane.b32.xlu0 %v600, 127
    %v606 = vpop.permute.xlu0 %605
    %v609 = vadd.f32 %v595, %v604
    %v610 = vadd.f32 %v596, %v606
    %s611 = sld [smem:[#allocation2 + $0x5b]]
    %v612 = vstv %s611
    %v613 = vmul.f32 %v612, %v59
    %v614 = vmul.f32 %v612, %v63
    %617 = vrot.lane.b32.xlu0 %v613, 126
    %v618 = vpop.permute.xlu0 %617
    %619 = vrot.lane.b32.xlu0 %v614, 126
    %v620 = vpop.permute.xlu0 %619
    %v623 = vadd.f32 %v609, %v618
    %v624 = vadd.f32 %v610, %v620
    %s625 = scalar_lea.vmem [#allocation9], 12
    %626 = vst.msk [vmem:[%s625] sm:$0xf] %vm202, %v623
    %627 = vst.msk [vmem:[%s625 + $0x20] sm:$0xf] %vm202, %v624
    %s628 = sld [smem:[#allocation6 + $0x4]]
    %v629 = vstv %s628
    %s630 = sld [smem:[#allocation2 + $0x4]]
    %v631 = vstv %s630
    %v632 = vmul.f32 %v631, %v56
    %v633 = vmul.f32 %v631, %v60
    %v634 = vadd.f32 %v629, %v632
    %v635 = vadd.f32 %v629, %v633
    %s636 = sld [smem:[#allocation2 + $0xc]]
    %v637 = vstv %s636
    %v638 = vmul.f32 %v637, %v56
    %v639 = vmul.f32 %v637, %v60
    %642 = vrot.lane.b32.xlu0 %v638, 127
    %v643 = vpop.permute.xlu0 %642
    %644 = vrot.lane.b32.xlu0 %v639, 127
    %v645 = vpop.permute.xlu0 %644
    %v648 = vadd.f32 %v634, %v643
    %v649 = vadd.f32 %v635, %v645
    %s650 = sld [smem:[#allocation2 + $0x14]]
    %v651 = vstv %s650
    %v652 = vmul.f32 %v651, %v56
    %v653 = vmul.f32 %v651, %v60
    %656 = vrot.lane.b32.xlu0 %v652, 126
    %v657 = vpop.permute.xlu0 %656
    %658 = vrot.lane.b32.xlu0 %v653, 126
    %v659 = vpop.permute.xlu0 %658
    %v662 = vadd.f32 %v648, %v657
    %v663 = vadd.f32 %v649, %v659
    %s664 = sld [smem:[#allocation2 + $0x1c]]
    %v665 = vstv %s664
    %v666 = vmul.f32 %v665, %v57
    %v667 = vmul.f32 %v665, %v61
    %v668 = vadd.f32 %v662, %v666
    %v669 = vadd.f32 %v663, %v667
    %s670 = sld [smem:[#allocation2 + $0x24]]
    %v671 = vstv %s670
    %v672 = vmul.f32 %v671, %v57
    %v673 = vmul.f32 %v671, %v61
    %676 = vrot.lane.b32.xlu0 %v672, 127
    %v677 = vpop.permute.xlu0 %676
    %678 = vrot.lane.b32.xlu0 %v673, 127
    %v679 = vpop.permute.xlu0 %678
    %v682 = vadd.f32 %v668, %v677
    %v683 = vadd.f32 %v669, %v679
    %s684 = sld [smem:[#allocation2 + $0x2c]]
    %v685 = vstv %s684
    %v686 = vmul.f32 %v685, %v57
    %v687 = vmul.f32 %v685, %v61
    %690 = vrot.lane.b32.xlu0 %v686, 126
    %v691 = vpop.permute.xlu0 %690
    %692 = vrot.lane.b32.xlu0 %v687, 126
    %v693 = vpop.permute.xlu0 %692
    %v696 = vadd.f32 %v682, %v691
    %v697 = vadd.f32 %v683, %v693
    %s698 = sld [smem:[#allocation2 + $0x34]]
    %v699 = vstv %s698
    %v700 = vmul.f32 %v699, %v58
    %v701 = vmul.f32 %v699, %v62
    %v702 = vadd.f32 %v696, %v700
    %v703 = vadd.f32 %v697, %v701
    %s704 = sld [smem:[#allocation2 + $0x3c]]
    %v705 = vstv %s704
    %v706 = vmul.f32 %v705, %v58
    %v707 = vmul.f32 %v705, %v62
    %710 = vrot.lane.b32.xlu0 %v706, 127
    %v711 = vpop.permute.xlu0 %710
    %712 = vrot.lane.b32.xlu0 %v707, 127
    %v713 = vpop.permute.xlu0 %712
    %v716 = vadd.f32 %v702, %v711
    %v717 = vadd.f32 %v703, %v713
    %s718 = sld [smem:[#allocation2 + $0x44]]
    %v719 = vstv %s718
    %v720 = vmul.f32 %v719, %v58
    %v721 = vmul.f32 %v719, %v62
    %724 = vrot.lane.b32.xlu0 %v720, 126
    %v725 = vpop.permute.xlu0 %724
    %726 = vrot.lane.b32.xlu0 %v721, 126
    %v727 = vpop.permute.xlu0 %726
    %v730 = vadd.f32 %v716, %v725
    %v731 = vadd.f32 %v717, %v727
    %s732 = sld [smem:[#allocation2 + $0x4c]]
    %v733 = vstv %s732
    %v734 = vmul.f32 %v733, %v59
    %v735 = vmul.f32 %v733, %v63
    %v736 = vadd.f32 %v730, %v734
    %v737 = vadd.f32 %v731, %v735
    %s738 = sld [smem:[#allocation2 + $0x54]]
    %v739 = vstv %s738
    %v740 = vmul.f32 %v739, %v59
    %v741 = vmul.f32 %v739, %v63
    %744 = vrot.lane.b32.xlu0 %v740, 127
    %v745 = vpop.permute.xlu0 %744
    %746 = vrot.lane.b32.xlu0 %v741, 127
    %v747 = vpop.permute.xlu0 %746
    %v750 = vadd.f32 %v736, %v745
    %v751 = vadd.f32 %v737, %v747
    %s752 = sld [smem:[#allocation2 + $0x5c]]
    %v753 = vstv %s752
    %v754 = vmul.f32 %v753, %v59
    %v755 = vmul.f32 %v753, %v63
    %758 = vrot.lane.b32.xlu0 %v754, 126
    %v759 = vpop.permute.xlu0 %758
    %760 = vrot.lane.b32.xlu0 %v755, 126
    %v761 = vpop.permute.xlu0 %760
    %v764 = vadd.f32 %v750, %v759
    %v765 = vadd.f32 %v751, %v761
    %s766 = scalar_lea.vmem [#allocation9], 16
    %767 = vst.msk [vmem:[%s766] sm:$0xf] %vm202, %v764
    %768 = vst.msk [vmem:[%s766 + $0x20] sm:$0xf] %vm202, %v765
    %s769 = sld [smem:[#allocation6 + $0x5]]
    %v770 = vstv %s769
    %s771 = sld [smem:[#allocation2 + $0x5]]
    %v772 = vstv %s771
    %v773 = vmul.f32 %v772, %v56
    %v774 = vmul.f32 %v772, %v60
    %v775 = vadd.f32 %v770, %v773
    %v776 = vadd.f32 %v770, %v774
    %s777 = sld [smem:[#allocation2 + $0xd]]
    %v778 = vstv %s777
    %v779 = vmul.f32 %v778, %v56
    %v780 = vmul.f32 %v778, %v60
    %783 = vrot.lane.b32.xlu0 %v779, 127
    %v784 = vpop.permute.xlu0 %783
    %785 = vrot.lane.b32.xlu0 %v780, 127
    %v786 = vpop.permute.xlu0 %785
    %v789 = vadd.f32 %v775, %v784
    %v790 = vadd.f32 %v776, %v786
    %s791 = sld [smem:[#allocation2 + $0x15]]
    %v792 = vstv %s791
    %v793 = vmul.f32 %v792, %v56
    %v794 = vmul.f32 %v792, %v60
    %797 = vrot.lane.b32.xlu0 %v793, 126
    %v798 = vpop.permute.xlu0 %797
    %799 = vrot.lane.b32.xlu0 %v794, 126
    %v800 = vpop.permute.xlu0 %799
    %v803 = vadd.f32 %v789, %v798
    %v804 = vadd.f32 %v790, %v800
    %s805 = sld [smem:[#allocation2 + $0x1d]]
    %v806 = vstv %s805
    %v807 = vmul.f32 %v806, %v57
    %v808 = vmul.f32 %v806, %v61
    %v809 = vadd.f32 %v803, %v807
    %v810 = vadd.f32 %v804, %v808
    %s811 = sld [smem:[#allocation2 + $0x25]]
    %v812 = vstv %s811
    %v813 = vmul.f32 %v812, %v57
    %v814 = vmul.f32 %v812, %v61
    %817 = vrot.lane.b32.xlu0 %v813, 127
    %v818 = vpop.permute.xlu0 %817
    %819 = vrot.lane.b32.xlu0 %v814, 127
    %v820 = vpop.permute.xlu0 %819
    %v823 = vadd.f32 %v809, %v818
    %v824 = vadd.f32 %v810, %v820
    %s825 = sld [smem:[#allocation2 + $0x2d]]
    %v826 = vstv %s825
    %v827 = vmul.f32 %v826, %v57
    %v828 = vmul.f32 %v826, %v61
    %831 = vrot.lane.b32.xlu0 %v827, 126
    %v832 = vpop.permute.xlu0 %831
    %833 = vrot.lane.b32.xlu0 %v828, 126
    %v834 = vpop.permute.xlu0 %833
    %v837 = vadd.f32 %v823, %v832
    %v838 = vadd.f32 %v824, %v834
    %s839 = sld [smem:[#allocation2 + $0x35]]
    %v840 = vstv %s839
    %v841 = vmul.f32 %v840, %v58
    %v842 = vmul.f32 %v840, %v62
    %v843 = vadd.f32 %v837, %v841
    %v844 = vadd.f32 %v838, %v842
    %s845 = sld [smem:[#allocation2 + $0x3d]]
    %v846 = vstv %s845
    %v847 = vmul.f32 %v846, %v58
    %v848 = vmul.f32 %v846, %v62
    %851 = vrot.lane.b32.xlu0 %v847, 127
    %v852 = vpop.permute.xlu0 %851
    %853 = vrot.lane.b32.xlu0 %v848, 127
    %v854 = vpop.permute.xlu0 %853
    %v857 = vadd.f32 %v843, %v852
    %v858 = vadd.f32 %v844, %v854
    %s859 = sld [smem:[#allocation2 + $0x45]]
    %v860 = vstv %s859
    %v861 = vmul.f32 %v860, %v58
    %v862 = vmul.f32 %v860, %v62
    %865 = vrot.lane.b32.xlu0 %v861, 126
    %v866 = vpop.permute.xlu0 %865
    %867 = vrot.lane.b32.xlu0 %v862, 126
    %v868 = vpop.permute.xlu0 %867
    %v871 = vadd.f32 %v857, %v866
    %v872 = vadd.f32 %v858, %v868
    %s873 = sld [smem:[#allocation2 + $0x4d]]
    %v874 = vstv %s873
    %v875 = vmul.f32 %v874, %v59
    %v876 = vmul.f32 %v874, %v63
    %v877 = vadd.f32 %v871, %v875
    %v878 = vadd.f32 %v872, %v876
    %s879 = sld [smem:[#allocation2 + $0x55]]
    %v880 = vstv %s879
    %v881 = vmul.f32 %v880, %v59
    %v882 = vmul.f32 %v880, %v63
    %885 = vrot.lane.b32.xlu0 %v881, 127
    %v886 = vpop.permute.xlu0 %885
    %887 = vrot.lane.b32.xlu0 %v882, 127
    %v888 = vpop.permute.xlu0 %887
    %v891 = vadd.f32 %v877, %v886
    %v892 = vadd.f32 %v878, %v888
    %s893 = sld [smem:[#allocation2 + $0x5d]]
    %v894 = vstv %s893
    %v895 = vmul.f32 %v894, %v59
    %v896 = vmul.f32 %v894, %v63
    %899 = vrot.lane.b32.xlu0 %v895, 126
    %v900 = vpop.permute.xlu0 %899
    %901 = vrot.lane.b32.xlu0 %v896, 126
    %v902 = vpop.permute.xlu0 %901
    %v905 = vadd.f32 %v891, %v900
    %v906 = vadd.f32 %v892, %v902
    %s907 = scalar_lea.vmem [#allocation9], 20
    %908 = vst.msk [vmem:[%s907] sm:$0xf] %vm202, %v905
    %909 = vst.msk [vmem:[%s907 + $0x20] sm:$0xf] %vm202, %v906
    %s910 = sld [smem:[#allocation6 + $0x6]]
    %v911 = vstv %s910
    %s912 = sld [smem:[#allocation2 + $0x6]]
    %v913 = vstv %s912
    %v914 = vmul.f32 %v913, %v56
    %v915 = vmul.f32 %v913, %v60
    %v916 = vadd.f32 %v911, %v914
    %v917 = vadd.f32 %v911, %v915
    %s918 = sld [smem:[#allocation2 + $0xe]]
    %v919 = vstv %s918
    %v920 = vmul.f32 %v919, %v56
    %v921 = vmul.f32 %v919, %v60
    %924 = vrot.lane.b32.xlu0 %v920, 127
    %v925 = vpop.permute.xlu0 %924
    %926 = vrot.lane.b32.xlu0 %v921, 127
    %v927 = vpop.permute.xlu0 %926
    %v930 = vadd.f32 %v916, %v925
    %v931 = vadd.f32 %v917, %v927
    %s932 = sld [smem:[#allocation2 + $0x16]]
    %v933 = vstv %s932
    %v934 = vmul.f32 %v933, %v56
    %v935 = vmul.f32 %v933, %v60
    %938 = vrot.lane.b32.xlu0 %v934, 126
    %v939 = vpop.permute.xlu0 %938
    %940 = vrot.lane.b32.xlu0 %v935, 126
    %v941 = vpop.permute.xlu0 %940
    %v944 = vadd.f32 %v930, %v939
    %v945 = vadd.f32 %v931, %v941
    %s946 = sld [smem:[#allocation2 + $0x1e]]
    %v947 = vstv %s946
    %v948 = vmul.f32 %v947, %v57
    %v949 = vmul.f32 %v947, %v61
    %v950 = vadd.f32 %v944, %v948
    %v951 = vadd.f32 %v945, %v949
    %s952 = sld [smem:[#allocation2 + $0x26]]
    %v953 = vstv %s952
    %v954 = vmul.f32 %v953, %v57
    %v955 = vmul.f32 %v953, %v61
    %958 = vrot.lane.b32.xlu0 %v954, 127
    %v959 = vpop.permute.xlu0 %958
    %960 = vrot.lane.b32.xlu0 %v955, 127
    %v961 = vpop.permute.xlu0 %960
    %v964 = vadd.f32 %v950, %v959
    %v965 = vadd.f32 %v951, %v961
    %s966 = sld [smem:[#allocation2 + $0x2e]]
    %v967 = vstv %s966
    %v968 = vmul.f32 %v967, %v57
    %v969 = vmul.f32 %v967, %v61
    %972 = vrot.lane.b32.xlu0 %v968, 126
    %v973 = vpop.permute.xlu0 %972
    %974 = vrot.lane.b32.xlu0 %v969, 126
    %v975 = vpop.permute.xlu0 %974
    %v978 = vadd.f32 %v964, %v973
    %v979 = vadd.f32 %v965, %v975
    %s980 = sld [smem:[#allocation2 + $0x36]]
    %v981 = vstv %s980
    %v982 = vmul.f32 %v981, %v58
    %v983 = vmul.f32 %v981, %v62
    %v984 = vadd.f32 %v978, %v982
    %v985 = vadd.f32 %v979, %v983
    %s986 = sld [smem:[#allocation2 + $0x3e]]
    %v987 = vstv %s986
    %v988 = vmul.f32 %v987, %v58
    %v989 = vmul.f32 %v987, %v62
    %992 = vrot.lane.b32.xlu0 %v988, 127
    %v993 = vpop.permute.xlu0 %992
    %994 = vrot.lane.b32.xlu0 %v989, 127
    %v995 = vpop.permute.xlu0 %994
    %v998 = vadd.f32 %v984, %v993
    %v999 = vadd.f32 %v985, %v995
    %s1000 = sld [smem:[#allocation2 + $0x46]]
    %v1001 = vstv %s1000
    %v1002 = vmul.f32 %v1001, %v58
    %v1003 = vmul.f32 %v1001, %v62
    %1006 = vrot.lane.b32.xlu0 %v1002, 126
    %v1007 = vpop.permute.xlu0 %1006
    %1008 = vrot.lane.b32.xlu0 %v1003, 126
    %v1009 = vpop.permute.xlu0 %1008
    %v1012 = vadd.f32 %v998, %v1007
    %v1013 = vadd.f32 %v999, %v1009
    %s1014 = sld [smem:[#allocation2 + $0x4e]]
    %v1015 = vstv %s1014
    %v1016 = vmul.f32 %v1015, %v59
    %v1017 = vmul.f32 %v1015, %v63
    %v1018 = vadd.f32 %v1012, %v1016
    %v1019 = vadd.f32 %v1013, %v1017
    %s1020 = sld [smem:[#allocation2 + $0x56]]
    %v1021 = vstv %s1020
    %v1022 = vmul.f32 %v1021, %v59
    %v1023 = vmul.f32 %v1021, %v63
    %1026 = vrot.lane.b32.xlu0 %v1022, 127
    %v1027 = vpop.permute.xlu0 %1026
    %1028 = vrot.lane.b32.xlu0 %v1023, 127
    %v1029 = vpop.permute.xlu0 %1028
    %v1032 = vadd.f32 %v1018, %v1027
    %v1033 = vadd.f32 %v1019, %v1029
    %s1034 = sld [smem:[#allocation2 + $0x5e]]
    %v1035 = vstv %s1034
    %v1036 = vmul.f32 %v1035, %v59
    %v1037 = vmul.f32 %v1035, %v63
    %1040 = vrot.lane.b32.xlu0 %v1036, 126
    %v1041 = vpop.permute.xlu0 %1040
    %1042 = vrot.lane.b32.xlu0 %v1037, 126
    %v1043 = vpop.permute.xlu0 %1042
    %v1046 = vadd.f32 %v1032, %v1041
    %v1047 = vadd.f32 %v1033, %v1043
    %s1048 = scalar_lea.vmem [#allocation9], 24
    %1049 = vst.msk [vmem:[%s1048] sm:$0xf] %vm202, %v1046
    %1050 = vst.msk [vmem:[%s1048 + $0x20] sm:$0xf] %vm202, %v1047
    %s1051 = sld [smem:[#allocation6 + $0x7]]
    %v1052 = vstv %s1051
    %s1053 = sld [smem:[#allocation2 + $0x7]]
    %v1054 = vstv %s1053
    %v1055 = vmul.f32 %v1054, %v56
    %v1056 = vmul.f32 %v1054, %v60
    %v1057 = vadd.f32 %v1052, %v1055
    %v1058 = vadd.f32 %v1052, %v1056
    %s1059 = sld [smem:[#allocation2 + $0xf]]
    %v1060 = vstv %s1059
    %v1061 = vmul.f32 %v1060, %v56
    %v1062 = vmul.f32 %v1060, %v60
    %1065 = vrot.lane.b32.xlu0 %v1061, 127
    %v1066 = vpop.permute.xlu0 %1065
    %1067 = vrot.lane.b32.xlu0 %v1062, 127
    %v1068 = vpop.permute.xlu0 %1067
    %v1071 = vadd.f32 %v1057, %v1066
    %v1072 = vadd.f32 %v1058, %v1068
    %s1073 = sld [smem:[#allocation2 + $0x17]]
    %v1074 = vstv %s1073
    %v1075 = vmul.f32 %v1074, %v56
    %v1076 = vmul.f32 %v1074, %v60
    %1079 = vrot.lane.b32.xlu0 %v1075, 126
    %v1080 = vpop.permute.xlu0 %1079
    %1081 = vrot.lane.b32.xlu0 %v1076, 126
    %v1082 = vpop.permute.xlu0 %1081
    %v1085 = vadd.f32 %v1071, %v1080
    %v1086 = vadd.f32 %v1072, %v1082
    %s1087 = sld [smem:[#allocation2 + $0x1f]]
    %v1088 = vstv %s1087
    %v1089 = vmul.f32 %v1088, %v57
    %v1090 = vmul.f32 %v1088, %v61
    %v1091 = vadd.f32 %v1085, %v1089
    %v1092 = vadd.f32 %v1086, %v1090
    %s1093 = sld [smem:[#allocation2 + $0x27]]
    %v1094 = vstv %s1093
    %v1095 = vmul.f32 %v1094, %v57
    %v1096 = vmul.f32 %v1094, %v61
    %1099 = vrot.lane.b32.xlu0 %v1095, 127
    %v1100 = vpop.permute.xlu0 %1099
    %1101 = vrot.lane.b32.xlu0 %v1096, 127
    %v1102 = vpop.permute.xlu0 %1101
    %v1105 = vadd.f32 %v1091, %v1100
    %v1106 = vadd.f32 %v1092, %v1102
    %s1107 = sld [smem:[#allocation2 + $0x2f]]
    %v1108 = vstv %s1107
    %v1109 = vmul.f32 %v1108, %v57
    %v1110 = vmul.f32 %v1108, %v61
    %1113 = vrot.lane.b32.xlu0 %v1109, 126
    %v1114 = vpop.permute.xlu0 %1113
    %1115 = vrot.lane.b32.xlu0 %v1110, 126
    %v1116 = vpop.permute.xlu0 %1115
    %v1119 = vadd.f32 %v1105, %v1114
    %v1120 = vadd.f32 %v1106, %v1116
    %s1121 = sld [smem:[#allocation2 + $0x37]]
    %v1122 = vstv %s1121
    %v1123 = vmul.f32 %v1122, %v58
    %v1124 = vmul.f32 %v1122, %v62
    %v1125 = vadd.f32 %v1119, %v1123
    %v1126 = vadd.f32 %v1120, %v1124
    %s1127 = sld [smem:[#allocation2 + $0x3f]]
    %v1128 = vstv %s1127
    %v1129 = vmul.f32 %v1128, %v58
    %v1130 = vmul.f32 %v1128, %v62
    %1133 = vrot.lane.b32.xlu0 %v1129, 127
    %v1134 = vpop.permute.xlu0 %1133
    %1135 = vrot.lane.b32.xlu0 %v1130, 127
    %v1136 = vpop.permute.xlu0 %1135
    %v1139 = vadd.f32 %v1125, %v1134
    %v1140 = vadd.f32 %v1126, %v1136
    %s1141 = sld [smem:[#allocation2 + $0x47]]
    %v1142 = vstv %s1141
    %v1143 = vmul.f32 %v1142, %v58
    %v1144 = vmul.f32 %v1142, %v62
    %1147 = vrot.lane.b32.xlu0 %v1143, 126
    %v1148 = vpop.permute.xlu0 %1147
    %1149 = vrot.lane.b32.xlu0 %v1144, 126
    %v1150 = vpop.permute.xlu0 %1149
    %v1153 = vadd.f32 %v1139, %v1148
    %v1154 = vadd.f32 %v1140, %v1150
    %s1155 = sld [smem:[#allocation2 + $0x4f]]
    %v1156 = vstv %s1155
    %v1157 = vmul.f32 %v1156, %v59
    %v1158 = vmul.f32 %v1156, %v63
    %v1159 = vadd.f32 %v1153, %v1157
    %v1160 = vadd.f32 %v1154, %v1158
    %s1161 = sld [smem:[#allocation2 + $0x57]]
    %v1162 = vstv %s1161
    %v1163 = vmul.f32 %v1162, %v59
    %v1164 = vmul.f32 %v1162, %v63
    %1167 = vrot.lane.b32.xlu0 %v1163, 127
    %v1168 = vpop.permute.xlu0 %1167
    %1169 = vrot.lane.b32.xlu0 %v1164, 127
    %v1170 = vpop.permute.xlu0 %1169
    %v1173 = vadd.f32 %v1159, %v1168
    %v1174 = vadd.f32 %v1160, %v1170
    %s1175 = sld [smem:[#allocation2 + $0x5f]]
    %v1176 = vstv %s1175
    %v1177 = vmul.f32 %v1176, %v59
    %v1178 = vmul.f32 %v1176, %v63
    %1181 = vrot.lane.b32.xlu0 %v1177, 126
    %v1182 = vpop.permute.xlu0 %1181
    %1183 = vrot.lane.b32.xlu0 %v1178, 126
    %v1184 = vpop.permute.xlu0 %1183
    %v1187 = vadd.f32 %v1173, %v1182
    %v1188 = vadd.f32 %v1174, %v1184
    %s1189 = scalar_lea.vmem [#allocation9], 28
    %1190 = vst.msk [vmem:[%s1189] sm:$0xf] %vm202, %v1187
    %1191 = vst.msk [vmem:[%s1189 + $0x20] sm:$0xf] %vm202, %v1188
    // Predicated region
    $region26: #{tpu_custom_call.1} parent=1 // pred_check
      _
    $region27: #{tpu_custom_call.1} parent=1 // pred_check_branch
      %1193 = sbr.rel (0) target = $region29
    $region28: #{tpu_custom_call.1} parent=1 // pred_region
      %1195 = vsyncadd [#allocation4], 0
      %s1196 = sshll.u32 [#allocation9], 4
      %s1197 = int_to_ptr.vmem [resolvable:$true] %s1196
      %s1198 = sshll.u32 %s3, 4
      %s1199 = int_to_ptr.hbm [resolvable:$true] %s1198
      %1204 = dma.vmem_to_hbm [thread:$0]  %s1197, 1024, %s1199, [#allocation4], 64, 64, 4
    $region29: #{tpu_custom_call.1} parent=1 // pred_fallthru
      _
    // Predicated region
    $region30: #{tpu_custom_call.1} parent=1 // pred_check
      _
    $region31: #{tpu_custom_call.1} parent=1 // pred_check_branch
      %1206 = sbr.rel (0) target = $region33
    $region32: #{tpu_custom_call.1} parent=1 // pred_region
      %1208 = dma.done [#allocation4], 1024
    $region33: #{tpu_custom_call.1} parent=1 // pred_fallthru
      _
    %1209 = vsyncpa [#allocation3], 1
    %1210 = vsyncpa [#allocation4], 1
    %1211 = vsyncpa [#allocation5], 1
    %1212 = vsyncpa [#allocation7], 1

</llo_original>
